<compile_context>
chip_gen: v6e
topology: v6e:2x2x1
jax: 0.10.0
libtpu: 0.0.40
codegen_flags: <defaults>
</compile_context>

<pallas_src>
from collections import namedtuple

import jax
import jax.numpy as jnp
from jax.experimental import pallas as pl
from jax.experimental.pallas import tpu as pltpu


def cond_ae_kernel(
    x_ref, c_ref,
    we1x_ref, we1c_ref, be1_ref,
    we2_ref, be2_ref,
    wd1z_ref, wd1c_ref, bd1_ref,
    wd2_ref, bd2_ref,
    xhat_ref, z_ref,
):
    # Streamed activations arrive f32; cast once to bf16 for the MXU.
    xb = x_ref[...].astype(jnp.bfloat16)          # (TB, input_size)
    cb = c_ref[...].astype(jnp.bfloat16)          # (TB, c_dim)

    # ---- encoder ----
    # Linear(input_size + c_dim, hidden1) + ReLU  (cat([x,c],1) folded as a sum)
    h1 = (
        jnp.dot(xb, we1x_ref[...], preferred_element_type=jnp.float32)
        + jnp.dot(cb, we1c_ref[...], preferred_element_type=jnp.float32)
        + be1_ref[...]
    )
    h1 = jnp.maximum(h1, 0.0)
    # Linear(hidden1, hidden2) + ReLU
    z = (
        jnp.dot(h1.astype(jnp.bfloat16), we2_ref[...],
                preferred_element_type=jnp.float32)
        + be2_ref[...]
    )
    z = jnp.maximum(z, 0.0)

    # ---- decoder ----
    # Linear(hidden2 + c_dim, hidden1) + ReLU   (cat([z,c],1) folded as a sum)
    d1 = (
        jnp.dot(z.astype(jnp.bfloat16), wd1z_ref[...],
                preferred_element_type=jnp.float32)
        + jnp.dot(cb, wd1c_ref[...], preferred_element_type=jnp.float32)
        + bd1_ref[...]
    )
    d1 = jnp.maximum(d1, 0.0)
    # Linear(hidden1, input_size) + Sigmoid   (final_layer=True)
    logits = (
        jnp.dot(d1.astype(jnp.bfloat16), wd2_ref[...],
                preferred_element_type=jnp.float32)
        + bd2_ref[...]
    )
    # sigmoid = 1 / (1 + exp(-x)); exp and the approx reciprocal both run on
    # the EUP slot, leaving the VALU slots for the cast/store epilogue.
    xhat = pl.reciprocal(1.0 + jnp.exp(-logits), approx=True)

    xhat_ref[...] = xhat.astype(xhat_ref.dtype)
    z_ref[...] = z.astype(z_ref.dtype)


def _round_up(n, m):
    return ((n + m - 1) // m) * m


CondAEDims = namedtuple(
    "CondAEDims", "input_size hidden1 hidden2 c_dim in_p h1_p h2_p")


def prepare_params(params):
    """One-time padding + bf16 cast of weights (hoisted out of the per-call path).

    Weights are stored as (in, out) so the kernel computes x @ W.  Only the
    output (lane) dims are padded to multiples of 128; padded rows/cols are
    zero, which is exact through the bias-add/ReLU chain.
    """
    we1x, we1c, be1, we2, be2, wd1z, wd1c, bd1, wd2, bd2 = params
    input_size, hidden1 = we1x.shape
    c_dim = we1c.shape[0]
    hidden2 = we2.shape[1]

    LANE = 128
    in_p = _round_up(input_size, LANE)
    h1_p = _round_up(hidden1, LANE)
    h2_p = _round_up(hidden2, LANE)

    def padw(w, rows, cols):           # bf16 matmul operand
        out = jnp.zeros((rows, cols), jnp.bfloat16)
        return out.at[: w.shape[0], : w.shape[1]].set(w.astype(jnp.bfloat16))

    def padb(b, cols):                 # f32 (1, N) row bias
        out = jnp.zeros((1, cols), jnp.float32)
        return out.at[:, : b.shape[1]].set(b.astype(jnp.float32))

    prepped = (
        padw(we1x, input_size, h1_p),   # K unpadded (x streamed at full width)
        padw(we1c, c_dim, h1_p),        # K unpadded (c streamed at full width)
        padb(be1, h1_p),
        padw(we2, h1_p, h2_p),          # K padded: h1 has lane width h1_p
        padb(be2, h2_p),
        padw(wd1z, h2_p, h1_p),         # K padded: z has lane width h2_p
        padw(wd1c, c_dim, h1_p),
        padb(bd1, h1_p),
        padw(wd2, h1_p, in_p),
        padb(bd2, in_p),
    )
    dims = CondAEDims(input_size, hidden1, hidden2, c_dim, in_p, h1_p, h2_p)
    return prepped, dims


def cond_ae_forward(x, c, prepped, dims, *, batch_tile=512,
                    out_dtype=jnp.bfloat16):
    """x: (B, input_size) f32, c: (B, c_dim) f32.  Returns (x_hat, z)."""
    B = x.shape[0]
    input_size, hidden1, hidden2, c_dim, in_p, h1_p, h2_p = dims
    out_bytes = jnp.dtype(out_dtype).itemsize

    # ---- batch tile selection ---------------------------------------------
    # Default 512 amortizes per-step overhead (v5e/v6e roofline measurements),
    # but cap so there are >= 2 grid steps when B allows it, so both v7x
    # TensorCores get batch tiles under "parallel" semantics.
    if B > 8:
        TB = min(batch_tile, _round_up(pl.cdiv(B, 2), 8))
    else:
        TB = _round_up(max(B, 1), 8)
    TB = max(TB, 8)

    # ---- derived VMEM footprint (conservative: 2x-buffered everything) -----
    w_elems = ((input_size + c_dim + h2_p + c_dim) * h1_p
               + h1_p * h2_p + h1_p * in_p)                     # bf16 weights
    b_elems = 2 * h1_p + h2_p + in_p                            # f32 biases

    def vmem_estimate(tb):
        stream_in = 2 * tb * (input_size + c_dim) * 4           # x, c (f32, 2x)
        stream_out = 2 * tb * (in_p + h2_p) * out_bytes         # outputs (2x)
        weights = 2 * w_elems * 2 + 2 * b_elems * 4             # worst case 2x
        inter = tb * (2 * h1_p + h2_p + in_p) * 4               # f32 live temps
        return stream_in + stream_out + weights + inter

    VMEM_BUDGET = 48 * 1024 * 1024   # stay well under v7x's 64 MiB physical VMEM
    while TB > 8 and vmem_estimate(TB) > VMEM_BUDGET:
        TB = max(8, _round_up(TB // 2, 8))

    vmem_limit = min(int(1.5 * vmem_estimate(TB)) + (16 << 20), 64 << 20)

    n_tiles = pl.cdiv(B, TB)
    B_p = n_tiles * TB

    # ---- only activation-dependent work per call: optional batch padding ---
    pad_rows = B_p - B
    if pad_rows:
        x_in = jnp.pad(x, ((0, pad_rows), (0, 0)))
        c_in = jnp.pad(c, ((0, pad_rows), (0, 0)))
    else:
        x_in, c_in = x, c

    batch_spec = lambda w: pl.BlockSpec((TB, w), lambda i: (i, 0))

    out_shapes = (
        jax.ShapeDtypeStruct((B_p, in_p), out_dtype),   # x_hat (padded)
        jax.ShapeDtypeStruct((B_p, h2_p), out_dtype),   # z     (padded)
    )

    def run(single_buffer_weights):
        def resident(shape):
            kwargs = {}
            if single_buffer_weights:
                # Constant index_map => double-buffering is pure VMEM waste.
                kwargs["pipeline_mode"] = pl.Buffered(1)
            return pl.BlockSpec(shape, lambda i: (0, 0), **kwargs)

        return pl.pallas_call(
            cond_ae_kernel,
            out_shape=out_shapes,
            grid=(n_tiles,),
            in_specs=[
                batch_spec(input_size),          # x  (full-width last dim)
                batch_spec(c_dim),               # c  (full-width last dim)
                resident((input_size, h1_p)),    # we1x
                resident((c_dim, h1_p)),         # we1c
                resident((1, h1_p)),             # be1
                resident((h1_p, h2_p)),          # we2
                resident((1, h2_p)),             # be2
                resident((h2_p, h1_p)),          # wd1z
                resident((c_dim, h1_p)),         # wd1c
                resident((1, h1_p)),             # bd1
                resident((h1_p, in_p)),          # wd2
                resident((1, in_p)),             # bd2
            ],
            out_specs=(batch_spec(in_p), batch_spec(h2_p)),
            compiler_params=pltpu.CompilerParams(
                # TODO(synk): if plain "parallel" does not shard batch tiles
                # across v7x's 2 TensorCores, switch to CORE_PARALLEL/core_map.
                dimension_semantics=("parallel",),
                vmem_limit_bytes=vmem_limit,
            ),
        )(x_in, c_in, *prepped)

    try:
        xhat_p, z_p = run(True)
    except Exception:
        # Fallback for toolchains where Buffered(1) on pallas_call BlockSpecs
        # is not supported: correct, just double-buffers the resident weights.
        xhat_p, z_p = run(False)

    return xhat_p[:B, :input_size], z_p[:B, :hidden2]


def init_params(key, input_size, hidden1, hidden2, c_dim):
    """Deterministic synthetic init.  Weights stored as (in, out) for x @ W."""
    ks = jax.random.split(key, 10)
    scale = 0.1
    we1x = scale * jax.random.normal(ks[0], (input_size, hidden1), jnp.float32)
    we1c = scale * jax.random.normal(ks[1], (c_dim, hidden1), jnp.float32)
    be1 = scale * jax.random.normal(ks[2], (1, hidden1), jnp.float32)
    we2 = scale * jax.random.normal(ks[3], (hidden1, hidden2), jnp.float32)
    be2 = scale * jax.random.normal(ks[4], (1, hidden2), jnp.float32)
    wd1z = scale * jax.random.normal(ks[5], (hidden2, hidden1), jnp.float32)
    wd1c = scale * jax.random.normal(ks[6], (c_dim, hidden1), jnp.float32)
    bd1 = scale * jax.random.normal(ks[7], (1, hidden1), jnp.float32)
    wd2 = scale * jax.random.normal(ks[8], (hidden1, input_size), jnp.float32)
    bd2 = scale * jax.random.normal(ks[9], (1, input_size), jnp.float32)
    return (we1x, we1c, be1, we2, be2, wd1z, wd1c, bd1, wd2, bd2)


def cond_ae_reference(x, c, params):
    we1x, we1c, be1, we2, be2, wd1z, wd1c, bd1, wd2, bd2 = params
    h1 = jnp.maximum(x @ we1x + c @ we1c + be1, 0.0)
    z = jnp.maximum(h1 @ we2 + be2, 0.0)
    d1 = jnp.maximum(z @ wd1z + c @ wd1c + bd1, 0.0)
    x_hat = jax.nn.sigmoid(d1 @ wd2 + bd2)
    return x_hat, z


if __name__ == "__main__":
    # Small shapes consistent with the module: x:(B, input_size), c:(B, c_dim)
    B, input_size, hidden1, hidden2, c_dim = 8, 32, 64, 16, 8

    key = jax.random.PRNGKey(0)
    kx, kc, kp = jax.random.split(key, 3)
    x = jax.random.normal(kx, (B, input_size), jnp.float32)
    c = jax.random.normal(kc, (B, c_dim), jnp.float32)
    params = init_params(kp, input_size, hidden1, hidden2, c_dim)

    prepped, dims = prepare_params(params)          # one-time weight prep
    x_hat, z = cond_ae_forward(x, c, prepped, dims)
    x_hat = jax.block_until_ready(x_hat)
    z = jax.block_until_ready(z)

    x_hat_ref, z_ref = cond_ae_reference(x, c, params)
    # bf16 matmul operands + bf16 outputs -> loosened tolerance vs f32 reference.
    assert jnp.allclose(x_hat.astype(jnp.float32), x_hat_ref,
                        atol=5e-2, rtol=5e-2), (
        float(jnp.max(jnp.abs(x_hat.astype(jnp.float32) - x_hat_ref))))
    assert jnp.allclose(z.astype(jnp.float32), z_ref,
                        atol=5e-2, rtol=5e-2), (
        float(jnp.max(jnp.abs(z.astype(jnp.float32) - z_ref))))

    print("KERNEL_OK")
</pallas_src>

<mosaic_0001>
module attributes {stable_mosaic.version = 11 : i64} {
  func.func @cond_ae_kernel(%arg0: i32, %arg1: memref<8x32xf32, #tpu.memory_space<vmem>>, %arg2: memref<8x8xf32, #tpu.memory_space<vmem>>, %arg3: memref<32x128xbf16, #tpu.memory_space<vmem>>, %arg4: memref<8x128xbf16, #tpu.memory_space<vmem>>, %arg5: memref<1x128xf32, #tpu.memory_space<vmem>>, %arg6: memref<128x128xbf16, #tpu.memory_space<vmem>>, %arg7: memref<1x128xf32, #tpu.memory_space<vmem>>, %arg8: memref<128x128xbf16, #tpu.memory_space<vmem>>, %arg9: memref<8x128xbf16, #tpu.memory_space<vmem>>, %arg10: memref<1x128xf32, #tpu.memory_space<vmem>>, %arg11: memref<128x128xbf16, #tpu.memory_space<vmem>>, %arg12: memref<1x128xf32, #tpu.memory_space<vmem>>, %arg13: memref<8x128xbf16, #tpu.memory_space<vmem>>, %arg14: memref<8x128xbf16, #tpu.memory_space<vmem>>) attributes {dimension_semantics = [#tpu.dimension_semantics<parallel>], iteration_bounds = array<i64: 1>, scalar_prefetch = 0 : i64, scratch_operands = 0 : i64, tpu.core_type = #tpu.core_type<tc>, window_params = [{transform_indices = @transform_0, window_bounds = array<i64: 8, 32>}, {transform_indices = @transform_1, window_bounds = array<i64: 8, 8>}, {pipeline_mode = #tpu.pipeline_mode<synchronous>, transform_indices = @transform_2, window_bounds = array<i64: 32, 128>}, {pipeline_mode = #tpu.pipeline_mode<synchronous>, transform_indices = @transform_3, window_bounds = array<i64: 8, 128>}, {pipeline_mode = #tpu.pipeline_mode<synchronous>, transform_indices = @transform_4, window_bounds = array<i64: 1, 128>}, {pipeline_mode = #tpu.pipeline_mode<synchronous>, transform_indices = @transform_5, window_bounds = array<i64: 128, 128>}, {pipeline_mode = #tpu.pipeline_mode<synchronous>, transform_indices = @transform_6, window_bounds = array<i64: 1, 128>}, {pipeline_mode = #tpu.pipeline_mode<synchronous>, transform_indices = @transform_7, window_bounds = array<i64: 128, 128>}, {pipeline_mode = #tpu.pipeline_mode<synchronous>, transform_indices = @transform_8, window_bounds = array<i64: 8, 128>}, {pipeline_mode = #tpu.pipeline_mode<synchronous>, transform_indices = @transform_9, window_bounds = array<i64: 1, 128>}, {pipeline_mode = #tpu.pipeline_mode<synchronous>, transform_indices = @transform_10, window_bounds = array<i64: 128, 128>}, {pipeline_mode = #tpu.pipeline_mode<synchronous>, transform_indices = @transform_11, window_bounds = array<i64: 1, 128>}, {transform_indices = @transform_12, window_bounds = array<i64: 8, 128>}, {transform_indices = @transform_13, window_bounds = array<i64: 8, 128>}]} {
    %c0 = arith.constant 0 : index
    %c0_0 = arith.constant 0 : index
    %0 = vector.load %arg1[%c0, %c0_0] : memref<8x32xf32, #tpu.memory_space<vmem>>, vector<8x32xf32>
    %1 = arith.truncf %0 : vector<8x32xf32> to vector<8x32xbf16>
    %c0_1 = arith.constant 0 : index
    %c0_2 = arith.constant 0 : index
    %2 = vector.load %arg2[%c0_1, %c0_2] : memref<8x8xf32, #tpu.memory_space<vmem>>, vector<8x8xf32>
    %3 = arith.truncf %2 : vector<8x8xf32> to vector<8x8xbf16>
    %c0_3 = arith.constant 0 : index
    %c0_4 = arith.constant 0 : index
    %4 = vector.load %arg3[%c0_3, %c0_4] : memref<32x128xbf16, #tpu.memory_space<vmem>>, vector<32x128xbf16>
    %cst = arith.constant dense<0.000000e+00> : vector<8x128xf32>
    %5 = tpu.matmul %1, %4, %cst {dimension_numbers = #tpu.dot_dimension_numbers<[1], [0], [0], [1], [0, 0, 1, 1], [], []>} : vector<8x32xbf16>, vector<32x128xbf16>, vector<8x128xf32> -> vector<8x128xf32>
    %c0_5 = arith.constant 0 : index
    %c0_6 = arith.constant 0 : index
    %6 = vector.load %arg4[%c0_5, %c0_6] : memref<8x128xbf16, #tpu.memory_space<vmem>>, vector<8x128xbf16>
    %cst_7 = arith.constant dense<0.000000e+00> : vector<8x128xf32>
    %7 = tpu.matmul %3, %6, %cst_7 {dimension_numbers = #tpu.dot_dimension_numbers<[1], [0], [0], [1], [0, 0, 1, 1], [], []>} : vector<8x8xbf16>, vector<8x128xbf16>, vector<8x128xf32> -> vector<8x128xf32>
    %8 = arith.addf %5, %7 : vector<8x128xf32>
    %c0_8 = arith.constant 0 : index
    %c0_9 = arith.constant 0 : index
    %9 = vector.load %arg5[%c0_8, %c0_9] : memref<1x128xf32, #tpu.memory_space<vmem>>, vector<1x128xf32>
    %10 = vector.broadcast %9 : vector<1x128xf32> to vector<8x128xf32>
    %11 = arith.addf %8, %10 : vector<8x128xf32>
    %cst_10 = arith.constant 0.000000e+00 : f32
    %12 = vector.broadcast %cst_10 : f32 to vector<8x128xf32>
    %13 = arith.maximumf %11, %12 : vector<8x128xf32>
    %14 = arith.truncf %13 : vector<8x128xf32> to vector<8x128xbf16>
    %c0_11 = arith.constant 0 : index
    %c0_12 = arith.constant 0 : index
    %15 = vector.load %arg6[%c0_11, %c0_12] : memref<128x128xbf16, #tpu.memory_space<vmem>>, vector<128x128xbf16>
    %cst_13 = arith.constant dense<0.000000e+00> : vector<8x128xf32>
    %16 = tpu.matmul %14, %15, %cst_13 {dimension_numbers = #tpu.dot_dimension_numbers<[1], [0], [0], [1], [0, 0, 1, 1], [], []>} : vector<8x128xbf16>, vector<128x128xbf16>, vector<8x128xf32> -> vector<8x128xf32>
    %c0_14 = arith.constant 0 : index
    %c0_15 = arith.constant 0 : index
    %17 = vector.load %arg7[%c0_14, %c0_15] : memref<1x128xf32, #tpu.memory_space<vmem>>, vector<1x128xf32>
    %18 = vector.broadcast %17 : vector<1x128xf32> to vector<8x128xf32>
    %19 = arith.addf %16, %18 : vector<8x128xf32>
    %cst_16 = arith.constant 0.000000e+00 : f32
    %20 = vector.broadcast %cst_16 : f32 to vector<8x128xf32>
    %21 = arith.maximumf %19, %20 : vector<8x128xf32>
    %22 = arith.truncf %21 : vector<8x128xf32> to vector<8x128xbf16>
    %c0_17 = arith.constant 0 : index
    %c0_18 = arith.constant 0 : index
    %23 = vector.load %arg8[%c0_17, %c0_18] : memref<128x128xbf16, #tpu.memory_space<vmem>>, vector<128x128xbf16>
    %cst_19 = arith.constant dense<0.000000e+00> : vector<8x128xf32>
    %24 = tpu.matmul %22, %23, %cst_19 {dimension_numbers = #tpu.dot_dimension_numbers<[1], [0], [0], [1], [0, 0, 1, 1], [], []>} : vector<8x128xbf16>, vector<128x128xbf16>, vector<8x128xf32> -> vector<8x128xf32>
    %c0_20 = arith.constant 0 : index
    %c0_21 = arith.constant 0 : index
    %25 = vector.load %arg9[%c0_20, %c0_21] : memref<8x128xbf16, #tpu.memory_space<vmem>>, vector<8x128xbf16>
    %cst_22 = arith.constant dense<0.000000e+00> : vector<8x128xf32>
    %26 = tpu.matmul %3, %25, %cst_22 {dimension_numbers = #tpu.dot_dimension_numbers<[1], [0], [0], [1], [0, 0, 1, 1], [], []>} : vector<8x8xbf16>, vector<8x128xbf16>, vector<8x128xf32> -> vector<8x128xf32>
    %27 = arith.addf %24, %26 : vector<8x128xf32>
    %c0_23 = arith.constant 0 : index
    %c0_24 = arith.constant 0 : index
    %28 = vector.load %arg10[%c0_23, %c0_24] : memref<1x128xf32, #tpu.memory_space<vmem>>, vector<1x128xf32>
    %29 = vector.broadcast %28 : vector<1x128xf32> to vector<8x128xf32>
    %30 = arith.addf %27, %29 : vector<8x128xf32>
    %cst_25 = arith.constant 0.000000e+00 : f32
    %31 = vector.broadcast %cst_25 : f32 to vector<8x128xf32>
    %32 = arith.maximumf %30, %31 : vector<8x128xf32>
    %33 = arith.truncf %32 : vector<8x128xf32> to vector<8x128xbf16>
    %c0_26 = arith.constant 0 : index
    %c0_27 = arith.constant 0 : index
    %34 = vector.load %arg11[%c0_26, %c0_27] : memref<128x128xbf16, #tpu.memory_space<vmem>>, vector<128x128xbf16>
    %cst_28 = arith.constant dense<0.000000e+00> : vector<8x128xf32>
    %35 = tpu.matmul %33, %34, %cst_28 {dimension_numbers = #tpu.dot_dimension_numbers<[1], [0], [0], [1], [0, 0, 1, 1], [], []>} : vector<8x128xbf16>, vector<128x128xbf16>, vector<8x128xf32> -> vector<8x128xf32>
    %c0_29 = arith.constant 0 : index
    %c0_30 = arith.constant 0 : index
    %36 = vector.load %arg12[%c0_29, %c0_30] : memref<1x128xf32, #tpu.memory_space<vmem>>, vector<1x128xf32>
    %37 = vector.broadcast %36 : vector<1x128xf32> to vector<8x128xf32>
    %38 = arith.addf %35, %37 : vector<8x128xf32>
    %cst_31 = arith.constant 0.000000e+00 : f32
    %39 = vector.broadcast %cst_31 : f32 to vector<8x128xf32>
    %40 = arith.subf %39, %38 : vector<8x128xf32>
    %41 = math.exp %40 : vector<8x128xf32>
    %cst_32 = arith.constant 1.000000e+00 : f32
    %42 = vector.broadcast %cst_32 : f32 to vector<8x128xf32>
    %43 = arith.addf %42, %41 : vector<8x128xf32>
    %44 = tpu.reciprocal %43 {approx = true} : vector<8x128xf32> -> vector<8x128xf32>
    %45 = arith.truncf %44 : vector<8x128xf32> to vector<8x128xbf16>
    %c0_33 = arith.constant 0 : index
    %c0_34 = arith.constant 0 : index
    %46 = vector.load %arg13[%c0_33, %c0_34] : memref<8x128xbf16, #tpu.memory_space<vmem>>, vector<8x128xbf16>
    tpu.vector_store %arg13[%c0_33, %c0_34], %45 {strides = array<i32>} : memref<8x128xbf16, #tpu.memory_space<vmem>>, vector<8x128xbf16>,
    %47 = arith.truncf %21 : vector<8x128xf32> to vector<8x128xbf16>
    %c0_35 = arith.constant 0 : index
    %c0_36 = arith.constant 0 : index
    %48 = vector.load %arg14[%c0_35, %c0_36] : memref<8x128xbf16, #tpu.memory_space<vmem>>, vector<8x128xbf16>
    tpu.vector_store %arg14[%c0_35, %c0_36], %47 {strides = array<i32>} : memref<8x128xbf16, #tpu.memory_space<vmem>>, vector<8x128xbf16>,
    return
  }
  func.func @transform_0(%arg0: i32) -> (i32, i32) {
    %c0_i32 = arith.constant 0 : i32
    %c0_i32_0 = arith.constant 0 : i32
    return %arg0, %c0_i32 : i32, i32
  }
  func.func @transform_1(%arg0: i32) -> (i32, i32) {
    %c0_i32 = arith.constant 0 : i32
    %c0_i32_0 = arith.constant 0 : i32
    return %arg0, %c0_i32 : i32, i32
  }
  func.func @transform_2(%arg0: i32) -> (i32, i32) {
    %c0_i32 = arith.constant 0 : i32
    %c0_i32_0 = arith.constant 0 : i32
    %c0_i32_1 = arith.constant 0 : i32
    return %c0_i32, %c0_i32_0 : i32, i32
  }
  func.func @transform_3(%arg0: i32) -> (i32, i32) {
    %c0_i32 = arith.constant 0 : i32
    %c0_i32_0 = arith.constant 0 : i32
    %c0_i32_1 = arith.constant 0 : i32
    return %c0_i32, %c0_i32_0 : i32, i32
  }
  func.func @transform_4(%arg0: i32) -> (i32, i32) {
    %c0_i32 = arith.constant 0 : i32
    %c0_i32_0 = arith.constant 0 : i32
    %c0_i32_1 = arith.constant 0 : i32
    return %c0_i32, %c0_i32_0 : i32, i32
  }
  func.func @transform_5(%arg0: i32) -> (i32, i32) {
    %c0_i32 = arith.constant 0 : i32
    %c0_i32_0 = arith.constant 0 : i32
    %c0_i32_1 = arith.constant 0 : i32
    return %c0_i32, %c0_i32_0 : i32, i32
  }
  func.func @transform_6(%arg0: i32) -> (i32, i32) {
    %c0_i32 = arith.constant 0 : i32
    %c0_i32_0 = arith.constant 0 : i32
    %c0_i32_1 = arith.constant 0 : i32
    return %c0_i32, %c0_i32_0 : i32, i32
  }
  func.func @transform_7(%arg0: i32) -> (i32, i32) {
    %c0_i32 = arith.constant 0 : i32
    %c0_i32_0 = arith.constant 0 : i32
    %c0_i32_1 = arith.constant 0 : i32
    return %c0_i32, %c0_i32_0 : i32, i32
  }
  func.func @transform_8(%arg0: i32) -> (i32, i32) {
    %c0_i32 = arith.constant 0 : i32
    %c0_i32_0 = arith.constant 0 : i32
    %c0_i32_1 = arith.constant 0 : i32
    return %c0_i32, %c0_i32_0 : i32, i32
  }
  func.func @transform_9(%arg0: i32) -> (i32, i32) {
    %c0_i32 = arith.constant 0 : i32
    %c0_i32_0 = arith.constant 0 : i32
    %c0_i32_1 = arith.constant 0 : i32
    return %c0_i32, %c0_i32_0 : i32, i32
  }
  func.func @transform_10(%arg0: i32) -> (i32, i32) {
    %c0_i32 = arith.constant 0 : i32
    %c0_i32_0 = arith.constant 0 : i32
    %c0_i32_1 = arith.constant 0 : i32
    return %c0_i32, %c0_i32_0 : i32, i32
  }
  func.func @transform_11(%arg0: i32) -> (i32, i32) {
    %c0_i32 = arith.constant 0 : i32
    %c0_i32_0 = arith.constant 0 : i32
    %c0_i32_1 = arith.constant 0 : i32
    return %c0_i32, %c0_i32_0 : i32, i32
  }
  func.func @transform_12(%arg0: i32) -> (i32, i32) {
    %c0_i32 = arith.constant 0 : i32
    %c0_i32_0 = arith.constant 0 : i32
    return %arg0, %c0_i32 : i32, i32
  }
  func.func @transform_13(%arg0: i32) -> (i32, i32) {
    %c0_i32 = arith.constant 0 : i32
    %c0_i32_0 = arith.constant 0 : i32
    return %arg0, %c0_i32 : i32, i32
  }
}

module attributes {stable_mosaic.version = 11 : i64} {
  func.func @cond_ae_kernel(%arg0: i32, %arg1: memref<8x32xf32, #tpu.memory_space<vmem>>, %arg2: memref<8x8xf32, #tpu.memory_space<vmem>>, %arg3: memref<32x128xbf16, #tpu.memory_space<vmem>>, %arg4: memref<8x128xbf16, #tpu.memory_space<vmem>>, %arg5: memref<1x128xf32, #tpu.memory_space<vmem>>, %arg6: memref<128x128xbf16, #tpu.memory_space<vmem>>, %arg7: memref<1x128xf32, #tpu.memory_space<vmem>>, %arg8: memref<128x128xbf16, #tpu.memory_space<vmem>>, %arg9: memref<8x128xbf16, #tpu.memory_space<vmem>>, %arg10: memref<1x128xf32, #tpu.memory_space<vmem>>, %arg11: memref<128x128xbf16, #tpu.memory_space<vmem>>, %arg12: memref<1x128xf32, #tpu.memory_space<vmem>>, %arg13: memref<8x128xbf16, #tpu.memory_space<vmem>>, %arg14: memref<8x128xbf16, #tpu.memory_space<vmem>>) attributes {dimension_semantics = [#tpu.dimension_semantics<parallel>], iteration_bounds = array<i64: 1>, scalar_prefetch = 0 : i64, scratch_operands = 0 : i64, tpu.core_type = #tpu.core_type<tc>, window_params = [{transform_indices = @transform_0, window_bounds = array<i64: 8, 32>}, {transform_indices = @transform_1, window_bounds = array<i64: 8, 8>}, {pipeline_mode = #tpu.pipeline_mode<synchronous>, transform_indices = @transform_2, window_bounds = array<i64: 32, 128>}, {pipeline_mode = #tpu.pipeline_mode<synchronous>, transform_indices = @transform_3, window_bounds = array<i64: 8, 128>}, {pipeline_mode = #tpu.pipeline_mode<synchronous>, transform_indices = @transform_4, window_bounds = array<i64: 1, 128>}, {pipeline_mode = #tpu.pipeline_mode<synchronous>, transform_indices = @transform_5, window_bounds = array<i64: 128, 128>}, {pipeline_mode = #tpu.pipeline_mode<synchronous>, transform_indices = @transform_6, window_bounds = array<i64: 1, 128>}, {pipeline_mode = #tpu.pipeline_mode<synchronous>, transform_indices = @transform_7, window_bounds = array<i64: 128, 128>}, {pipeline_mode = #tpu.pipeline_mode<synchronous>, transform_indices = @transform_8, window_bounds = array<i64: 8, 128>}, {pipeline_mode = #tpu.pipeline_mode<synchronous>, transform_indices = @transform_9, window_bounds = array<i64: 1, 128>}, {pipeline_mode = #tpu.pipeline_mode<synchronous>, transform_indices = @transform_10, window_bounds = array<i64: 128, 128>}, {pipeline_mode = #tpu.pipeline_mode<synchronous>, transform_indices = @transform_11, window_bounds = array<i64: 1, 128>}, {transform_indices = @transform_12, window_bounds = array<i64: 8, 128>}, {transform_indices = @transform_13, window_bounds = array<i64: 8, 128>}]} {
    %c0 = arith.constant 0 : index
    %c0_0 = arith.constant 0 : index
    %0 = vector.load %arg1[%c0, %c0_0] : memref<8x32xf32, #tpu.memory_space<vmem>>, vector<8x32xf32>
    %1 = arith.truncf %0 : vector<8x32xf32> to vector<8x32xbf16>
    %c0_1 = arith.constant 0 : index
    %c0_2 = arith.constant 0 : index
    %2 = vector.load %arg2[%c0_1, %c0_2] : memref<8x8xf32, #tpu.memory_space<vmem>>, vector<8x8xf32>
    %3 = arith.truncf %2 : vector<8x8xf32> to vector<8x8xbf16>
    %c0_3 = arith.constant 0 : index
    %c0_4 = arith.constant 0 : index
    %4 = vector.load %arg3[%c0_3, %c0_4] : memref<32x128xbf16, #tpu.memory_space<vmem>>, vector<32x128xbf16>
    %cst = arith.constant dense<0.000000e+00> : vector<8x128xf32>
    %5 = tpu.matmul %1, %4, %cst {dimension_numbers = #tpu.dot_dimension_numbers<[1], [0], [0], [1], [0, 0, 1, 1], [], []>} : vector<8x32xbf16>, vector<32x128xbf16>, vector<8x128xf32> -> vector<8x128xf32>
    %c0_5 = arith.constant 0 : index
    %c0_6 = arith.constant 0 : index
    %6 = vector.load %arg4[%c0_5, %c0_6] : memref<8x128xbf16, #tpu.memory_space<vmem>>, vector<8x128xbf16>
    %cst_7 = arith.constant dense<0.000000e+00> : vector<8x128xf32>
    %7 = tpu.matmul %3, %6, %cst_7 {dimension_numbers = #tpu.dot_dimension_numbers<[1], [0], [0], [1], [0, 0, 1, 1], [], []>} : vector<8x8xbf16>, vector<8x128xbf16>, vector<8x128xf32> -> vector<8x128xf32>
    %8 = arith.addf %5, %7 : vector<8x128xf32>
    %c0_8 = arith.constant 0 : index
    %c0_9 = arith.constant 0 : index
    %9 = vector.load %arg5[%c0_8, %c0_9] : memref<1x128xf32, #tpu.memory_space<vmem>>, vector<1x128xf32>
    %10 = vector.broadcast %9 : vector<1x128xf32> to vector<8x128xf32>
    %11 = arith.addf %8, %10 : vector<8x128xf32>
    %cst_10 = arith.constant 0.000000e+00 : f32
    %12 = vector.broadcast %cst_10 : f32 to vector<8x128xf32>
    %13 = arith.maximumf %11, %12 : vector<8x128xf32>
    %14 = arith.truncf %13 : vector<8x128xf32> to vector<8x128xbf16>
    %c0_11 = arith.constant 0 : index
    %c0_12 = arith.constant 0 : index
    %15 = vector.load %arg6[%c0_11, %c0_12] : memref<128x128xbf16, #tpu.memory_space<vmem>>, vector<128x128xbf16>
    %cst_13 = arith.constant dense<0.000000e+00> : vector<8x128xf32>
    %16 = tpu.matmul %14, %15, %cst_13 {dimension_numbers = #tpu.dot_dimension_numbers<[1], [0], [0], [1], [0, 0, 1, 1], [], []>} : vector<8x128xbf16>, vector<128x128xbf16>, vector<8x128xf32> -> vector<8x128xf32>
    %c0_14 = arith.constant 0 : index
    %c0_15 = arith.constant 0 : index
    %17 = vector.load %arg7[%c0_14, %c0_15] : memref<1x128xf32, #tpu.memory_space<vmem>>, vector<1x128xf32>
    %18 = vector.broadcast %17 : vector<1x128xf32> to vector<8x128xf32>
    %19 = arith.addf %16, %18 : vector<8x128xf32>
    %cst_16 = arith.constant 0.000000e+00 : f32
    %20 = vector.broadcast %cst_16 : f32 to vector<8x128xf32>
    %21 = arith.maximumf %19, %20 : vector<8x128xf32>
    %22 = arith.truncf %21 : vector<8x128xf32> to vector<8x128xbf16>
    %c0_17 = arith.constant 0 : index
    %c0_18 = arith.constant 0 : index
    %23 = vector.load %arg8[%c0_17, %c0_18] : memref<128x128xbf16, #tpu.memory_space<vmem>>, vector<128x128xbf16>
    %cst_19 = arith.constant dense<0.000000e+00> : vector<8x128xf32>
    %24 = tpu.matmul %22, %23, %cst_19 {dimension_numbers = #tpu.dot_dimension_numbers<[1], [0], [0], [1], [0, 0, 1, 1], [], []>} : vector<8x128xbf16>, vector<128x128xbf16>, vector<8x128xf32> -> vector<8x128xf32>
    %c0_20 = arith.constant 0 : index
    %c0_21 = arith.constant 0 : index
    %25 = vector.load %arg9[%c0_20, %c0_21] : memref<8x128xbf16, #tpu.memory_space<vmem>>, vector<8x128xbf16>
    %cst_22 = arith.constant dense<0.000000e+00> : vector<8x128xf32>
    %26 = tpu.matmul %3, %25, %cst_22 {dimension_numbers = #tpu.dot_dimension_numbers<[1], [0], [0], [1], [0, 0, 1, 1], [], []>} : vector<8x8xbf16>, vector<8x128xbf16>, vector<8x128xf32> -> vector<8x128xf32>
    %27 = arith.addf %24, %26 : vector<8x128xf32>
    %c0_23 = arith.constant 0 : index
    %c0_24 = arith.constant 0 : index
    %28 = vector.load %arg10[%c0_23, %c0_24] : memref<1x128xf32, #tpu.memory_space<vmem>>, vector<1x128xf32>
    %29 = vector.broadcast %28 : vector<1x128xf32> to vector<8x128xf32>
    %30 = arith.addf %27, %29 : vector<8x128xf32>
    %cst_25 = arith.constant 0.000000e+00 : f32
    %31 = vector.broadcast %cst_25 : f32 to vector<8x128xf32>
    %32 = arith.maximumf %30, %31 : vector<8x128xf32>
    %33 = arith.truncf %32 : vector<8x128xf32> to vector<8x128xbf16>
    %c0_26 = arith.constant 0 : index
    %c0_27 = arith.constant 0 : index
    %34 = vector.load %arg11[%c0_26, %c0_27] : memref<128x128xbf16, #tpu.memory_space<vmem>>, vector<128x128xbf16>
    %cst_28 = arith.constant dense<0.000000e+00> : vector<8x128xf32>
    %35 = tpu.matmul %33, %34, %cst_28 {dimension_numbers = #tpu.dot_dimension_numbers<[1], [0], [0], [1], [0, 0, 1, 1], [], []>} : vector<8x128xbf16>, vector<128x128xbf16>, vector<8x128xf32> -> vector<8x128xf32>
    %c0_29 = arith.constant 0 : index
    %c0_30 = arith.constant 0 : index
    %36 = vector.load %arg12[%c0_29, %c0_30] : memref<1x128xf32, #tpu.memory_space<vmem>>, vector<1x128xf32>
    %37 = vector.broadcast %36 : vector<1x128xf32> to vector<8x128xf32>
    %38 = arith.addf %35, %37 : vector<8x128xf32>
    %cst_31 = arith.constant 0.000000e+00 : f32
    %39 = vector.broadcast %cst_31 : f32 to vector<8x128xf32>
    %40 = arith.subf %39, %38 : vector<8x128xf32>
    %41 = math.exp %40 : vector<8x128xf32>
    %cst_32 = arith.constant 1.000000e+00 : f32
    %42 = vector.broadcast %cst_32 : f32 to vector<8x128xf32>
    %43 = arith.addf %42, %41 : vector<8x128xf32>
    %44 = tpu.reciprocal %43 {approx = true} : vector<8x128xf32> -> vector<8x128xf32>
    %45 = arith.truncf %44 : vector<8x128xf32> to vector<8x128xbf16>
    %c0_33 = arith.constant 0 : index
    %c0_34 = arith.constant 0 : index
    %46 = vector.load %arg13[%c0_33, %c0_34] : memref<8x128xbf16, #tpu.memory_space<vmem>>, vector<8x128xbf16>
    tpu.vector_store %arg13[%c0_33, %c0_34], %45 {strides = array<i32>} : memref<8x128xbf16, #tpu.memory_space<vmem>>, vector<8x128xbf16>,
    %47 = arith.truncf %21 : vector<8x128xf32> to vector<8x128xbf16>
    %c0_35 = arith.constant 0 : index
    %c0_36 = arith.constant 0 : index
    %48 = vector.load %arg14[%c0_35, %c0_36] : memref<8x128xbf16, #tpu.memory_space<vmem>>, vector<8x128xbf16>
    tpu.vector_store %arg14[%c0_35, %c0_36], %47 {strides = array<i32>} : memref<8x128xbf16, #tpu.memory_space<vmem>>, vector<8x128xbf16>,
    return
  }
  func.func @transform_0(%arg0: i32) -> (i32, i32) {
    %c0_i32 = arith.constant 0 : i32
    %c0_i32_0 = arith.constant 0 : i32
    return %arg0, %c0_i32 : i32, i32
  }
  func.func @transform_1(%arg0: i32) -> (i32, i32) {
    %c0_i32 = arith.constant 0 : i32
    %c0_i32_0 = arith.constant 0 : i32
    return %arg0, %c0_i32 : i32, i32
  }
  func.func @transform_2(%arg0: i32) -> (i32, i32) {
    %c0_i32 = arith.constant 0 : i32
    %c0_i32_0 = arith.constant 0 : i32
    %c0_i32_1 = arith.constant 0 : i32
    return %c0_i32, %c0_i32_0 : i32, i32
  }
  func.func @transform_3(%arg0: i32) -> (i32, i32) {
    %c0_i32 = arith.constant 0 : i32
    %c0_i32_0 = arith.constant 0 : i32
    %c0_i32_1 = arith.constant 0 : i32
    return %c0_i32, %c0_i32_0 : i32, i32
  }
  func.func @transform_4(%arg0: i32) -> (i32, i32) {
    %c0_i32 = arith.constant 0 : i32
    %c0_i32_0 = arith.constant 0 : i32
    %c0_i32_1 = arith.constant 0 : i32
    return %c0_i32, %c0_i32_0 : i32, i32
  }
  func.func @transform_5(%arg0: i32) -> (i32, i32) {
    %c0_i32 = arith.constant 0 : i32
    %c0_i32_0 = arith.constant 0 : i32
    %c0_i32_1 = arith.constant 0 : i32
    return %c0_i32, %c0_i32_0 : i32, i32
  }
  func.func @transform_6(%arg0: i32) -> (i32, i32) {
    %c0_i32 = arith.constant 0 : i32
    %c0_i32_0 = arith.constant 0 : i32
    %c0_i32_1 = arith.constant 0 : i32
    return %c0_i32, %c0_i32_0 : i32, i32
  }
  func.func @transform_7(%arg0: i32) -> (i32, i32) {
    %c0_i32 = arith.constant 0 : i32
    %c0_i32_0 = arith.constant 0 : i32
    %c0_i32_1 = arith.constant 0 : i32
    return %c0_i32, %c0_i32_0 : i32, i32
  }
  func.func @transform_8(%arg0: i32) -> (i32, i32) {
    %c0_i32 = arith.constant 0 : i32
    %c0_i32_0 = arith.constant 0 : i32
    %c0_i32_1 = arith.constant 0 : i32
    return %c0_i32, %c0_i32_0 : i32, i32
  }
  func.func @transform_9(%arg0: i32) -> (i32, i32) {
    %c0_i32 = arith.constant 0 : i32
    %c0_i32_0 = arith.constant 0 : i32
    %c0_i32_1 = arith.constant 0 : i32
    return %c0_i32, %c0_i32_0 : i32, i32
  }
  func.func @transform_10(%arg0: i32) -> (i32, i32) {
    %c0_i32 = arith.constant 0 : i32
    %c0_i32_0 = arith.constant 0 : i32
    %c0_i32_1 = arith.constant 0 : i32
    return %c0_i32, %c0_i32_0 : i32, i32
  }
  func.func @transform_11(%arg0: i32) -> (i32, i32) {
    %c0_i32 = arith.constant 0 : i32
    %c0_i32_0 = arith.constant 0 : i32
    %c0_i32_1 = arith.constant 0 : i32
    return %c0_i32, %c0_i32_0 : i32, i32
  }
  func.func @transform_12(%arg0: i32) -> (i32, i32) {
    %c0_i32 = arith.constant 0 : i32
    %c0_i32_0 = arith.constant 0 : i32
    return %arg0, %c0_i32 : i32, i32
  }
  func.func @transform_13(%arg0: i32) -> (i32, i32) {
    %c0_i32 = arith.constant 0 : i32
    %c0_i32_0 = arith.constant 0 : i32
    return %arg0, %c0_i32 : i32, i32
  }
}

</mosaic_0001>

<llo_original>
// kernel: tpu_custom_call.1
$region0: #{tpu_custom_call.1}
  #allocation0 [shape = 'u32[]', space=smem, size = 0x4, offset = 0x4, fixed_abs, tag = 'smem constant byte address 0x4 - core index']
  #allocation1 [shape = 'u32[144,128]{1,0:T(1,128)}', space=vmem, size = 0x12000, scoped, tag = 'internal scratch']
  %s0 = inlined_call_operand.hbm [shape: f32[8,32], index: 0, kind: input, shape index: {}]
  %s1 = inlined_call_operand.hbm [shape: f32[8,8], index: 1, kind: input, shape index: {}]
  %s2 = inlined_call_operand.hbm [shape: bf16[32,128], index: 2, kind: input, shape index: {}]
  %s3 = inlined_call_operand.vmem [shape: bf16[8,128], index: 3, kind: input, shape index: {}]
  %s4 = inlined_call_operand.vmem [shape: f32[1,128], index: 4, kind: input, shape index: {}]
  %s5 = inlined_call_operand.hbm [shape: bf16[128,128], index: 5, kind: input, shape index: {}]
  %s6 = inlined_call_operand.vmem [shape: f32[1,128], index: 6, kind: input, shape index: {}]
  %s7 = inlined_call_operand.hbm [shape: bf16[128,128], index: 7, kind: input, shape index: {}]
  %s8 = inlined_call_operand.vmem [shape: bf16[8,128], index: 8, kind: input, shape index: {}]
  %s9 = inlined_call_operand.vmem [shape: f32[1,128], index: 9, kind: input, shape index: {}]
  %s10 = inlined_call_operand.hbm [shape: bf16[128,128], index: 10, kind: input, shape index: {}]
  %s11 = inlined_call_operand.vmem [shape: f32[1,128], index: 11, kind: input, shape index: {}]
  %s12 = inlined_call_operand.hbm [shape: bf16[8,128], index: 12, kind: output, shape index: {0}]
  %s13 = inlined_call_operand.hbm [shape: bf16[8,128], index: 13, kind: output, shape index: {1}]
  %14 = xla_tuple %s12, %s13
  %s15 = sld [smem:[#allocation0]]
  $region90: #{tpu_custom_call.1} parent=0
    _
  %s17 = ssub.s32 1, %s15
  %s18 = scalar_select 0, %s17, %s15
  $region1: #{tpu_custom_call.1} parent=0
    #allocation2 [shape = 'u8[4096]{0}', space=vmem, size = 0x1000, scoped, tag = 'input window, operand 0, single buffered']
    #allocation3 [shape = 's32[1]{0}', space=sflag, size = 0x4, scoped, tag = 'scoped memory for tpu_custom_call.1']
    #allocation4 [shape = 's32[1]{0}', space=sflag, size = 0x4, scoped, tag = 'scoped memory for tpu_custom_call.1']
    #allocation5 [shape = 'u8[4096]{0}', space=vmem, size = 0x1000, scoped, tag = 'input window, operand 1, single buffered']
    #allocation6 [shape = 's32[1]{0}', space=sflag, size = 0x4, scoped, tag = 'scoped memory for tpu_custom_call.1']
    #allocation7 [shape = 'u8[8192]{0}', space=vmem, size = 0x2000, scoped, tag = 'input window, operand 2, single buffered']
    #allocation8 [shape = 'u8[32768]{0}', space=vmem, size = 0x8000, scoped, tag = 'input window, operand 5, single buffered']
    #allocation9 [shape = 's32[1]{0}', space=sflag, size = 0x4, scoped, tag = 'scoped memory for tpu_custom_call.1']
    #allocation10 [shape = 'u8[32768]{0}', space=vmem, size = 0x8000, scoped, tag = 'input window, operand 7, single buffered']
    #allocation11 [shape = 'u8[32768]{0}', space=vmem, size = 0x8000, scoped, tag = 'input window, operand 10, single buffered']
    #allocation12 [shape = 's32[1]{0}', space=sflag, size = 0x4, scoped, tag = 'scoped memory for tpu_custom_call.1']
    #allocation13 [shape = 'u8[2048]{0}', space=vmem, size = 0x800, scoped, tag = 'output window, operand 0, single buffered']
    #allocation14 [shape = 'u8[2048]{0}', space=vmem, size = 0x800, scoped, tag = 'output window, operand 1, single buffered']
    #allocation15 [shape = 's32[1]{0}', space=sflag, size = 0x4, scoped, tag = 'scoped memory for tpu_custom_call.1']
    %19 = vsyncpa [#allocation3], 0
    %20 = vsyncpa [#allocation6], 0
    %21 = vsyncpa [#allocation9], 0
    %22 = vsyncpa [#allocation12], 0
    %23 = vsyncpa [#allocation4], 0
    %24 = vsyncpa [#allocation15], 0
    // Predicated region
    $region2: #{tpu_custom_call.1} parent=1 // pred_check
      _
    $region3: #{tpu_custom_call.1} parent=1 // pred_check_branch
      %26 = sbr.rel (0) target = $region5
    $region4: #{tpu_custom_call.1} parent=1 // pred_region
      %s28 = ssub.s32 128, 128
      %29 = vsyncadd [#allocation3], %s28
      %s31 = sshll.u32 [#allocation2], 4
      %s32 = int_to_ptr.vmem [resolvable:$true] %s31
      %34 = dma.hbm_to_vmem [thread:$0]  %s0, 128, %s32, [#allocation3]
    $region5: #{tpu_custom_call.1} parent=1 // pred_fallthru
      _
    // Predicated region
    $region6: #{tpu_custom_call.1} parent=1 // pred_check
      _
    $region7: #{tpu_custom_call.1} parent=1 // pred_check_branch
      %36 = sbr.rel (0) target = $region9
    $region8: #{tpu_custom_call.1} parent=1 // pred_region
      %s38 = ssub.s32 128, 128
      %39 = vsyncadd [#allocation6], %s38
      %s41 = sshll.u32 [#allocation5], 4
      %s42 = int_to_ptr.vmem [resolvable:$true] %s41
      %44 = dma.hbm_to_vmem [thread:$0]  %s1, 128, %s42, [#allocation6]
    $region9: #{tpu_custom_call.1} parent=1 // pred_fallthru
      _
    // Predicated region
    $region10: #{tpu_custom_call.1} parent=1 // pred_check
      _
    $region11: #{tpu_custom_call.1} parent=1 // pred_check_branch
      %46 = sbr.rel (0) target = $region13
    $region12: #{tpu_custom_call.1} parent=1 // pred_region
      %s48 = ssub.s32 256, 256
      %49 = vsyncadd [#allocation6], %s48
      %s50 = sshll.u32 [#allocation7], 4
      %s51 = int_to_ptr.vmem [resolvable:$true] %s50
      %56 = dma.hbm_to_vmem [thread:$0]  %s2, 256, %s51, [#allocation6], 64, 64, 4
    $region13: #{tpu_custom_call.1} parent=1 // pred_fallthru
      _
    // Predicated region
    $region14: #{tpu_custom_call.1} parent=1 // pred_check
      _
    $region15: #{tpu_custom_call.1} parent=1 // pred_check_branch
      %58 = sbr.rel (0) target = $region17
    $region16: #{tpu_custom_call.1} parent=1 // pred_region
      _
    $region17: #{tpu_custom_call.1} parent=1 // pred_fallthru
      _
    // Predicated region
    $region18: #{tpu_custom_call.1} parent=1 // pred_check
      _
    $region19: #{tpu_custom_call.1} parent=1 // pred_check_branch
      %60 = sbr.rel (0) target = $region21
    $region20: #{tpu_custom_call.1} parent=1 // pred_region
      _
    $region21: #{tpu_custom_call.1} parent=1 // pred_fallthru
      _
    // Predicated region
    $region22: #{tpu_custom_call.1} parent=1 // pred_check
      _
    $region23: #{tpu_custom_call.1} parent=1 // pred_check_branch
      %62 = sbr.rel (0) target = $region25
    $region24: #{tpu_custom_call.1} parent=1 // pred_region
      %s64 = ssub.s32 1024, 1024
      %65 = vsyncadd [#allocation9], %s64
      %s66 = sshll.u32 [#allocation8], 4
      %s67 = int_to_ptr.vmem [resolvable:$true] %s66
      %72 = dma.hbm_to_vmem [thread:$0]  %s5, 1024, %s67, [#allocation9], 64, 64, 4
    $region25: #{tpu_custom_call.1} parent=1 // pred_fallthru
      _
    // Predicated region
    $region26: #{tpu_custom_call.1} parent=1 // pred_check
      _
    $region27: #{tpu_custom_call.1} parent=1 // pred_check_branch
      %74 = sbr.rel (0) target = $region29
    $region28: #{tpu_custom_call.1} parent=1 // pred_region
      _
    $region29: #{tpu_custom_call.1} parent=1 // pred_fallthru
      _
    // Predicated region
    $region30: #{tpu_custom_call.1} parent=1 // pred_check
      _
    $region31: #{tpu_custom_call.1} parent=1 // pred_check_branch
      %76 = sbr.rel (0) target = $region33
    $region32: #{tpu_custom_call.1} parent=1 // pred_region
      %s78 = ssub.s32 1024, 1024
      %79 = vsyncadd [#allocation9], %s78
      %s80 = sshll.u32 [#allocation10], 4
      %s81 = int_to_ptr.vmem [resolvable:$true] %s80
      %86 = dma.hbm_to_vmem [thread:$0]  %s7, 1024, %s81, [#allocation9], 64, 64, 4
    $region33: #{tpu_custom_call.1} parent=1 // pred_fallthru
      _
    // Predicated region
    $region34: #{tpu_custom_call.1} parent=1 // pred_check
      _
    $region35: #{tpu_custom_call.1} parent=1 // pred_check_branch
      %88 = sbr.rel (0) target = $region37
    $region36: #{tpu_custom_call.1} parent=1 // pred_region
      _
    $region37: #{tpu_custom_call.1} parent=1 // pred_fallthru
      _
    // Predicated region
    $region38: #{tpu_custom_call.1} parent=1 // pred_check
      _
    $region39: #{tpu_custom_call.1} parent=1 // pred_check_branch
      %90 = sbr.rel (0) target = $region41
    $region40: #{tpu_custom_call.1} parent=1 // pred_region
      _
    $region41: #{tpu_custom_call.1} parent=1 // pred_fallthru
      _
    // Predicated region
    $region42: #{tpu_custom_call.1} parent=1 // pred_check
      _
    $region43: #{tpu_custom_call.1} parent=1 // pred_check_branch
      %92 = sbr.rel (0) target = $region45
    $region44: #{tpu_custom_call.1} parent=1 // pred_region
      %s94 = ssub.s32 1024, 1024
      %95 = vsyncadd [#allocation12], %s94
      %s96 = sshll.u32 [#allocation11], 4
      %s97 = int_to_ptr.vmem [resolvable:$true] %s96
      %102 = dma.hbm_to_vmem [thread:$0]  %s10, 1024, %s97, [#allocation12], 64, 64, 4
    $region45: #{tpu_custom_call.1} parent=1 // pred_fallthru
      _
    // Predicated region
    $region46: #{tpu_custom_call.1} parent=1 // pred_check
      _
    $region47: #{tpu_custom_call.1} parent=1 // pred_check_branch
      %104 = sbr.rel (0) target = $region49
    $region48: #{tpu_custom_call.1} parent=1 // pred_region
      _
    $region49: #{tpu_custom_call.1} parent=1 // pred_fallthru
      _
    // Predicated region
    $region50: #{tpu_custom_call.1} parent=1 // pred_check
      _
    $region51: #{tpu_custom_call.1} parent=1 // pred_check_branch
      %106 = sbr.rel (0) target = $region53
    $region52: #{tpu_custom_call.1} parent=1 // pred_region
      %107 = dma.done [#allocation3], 128
    $region53: #{tpu_custom_call.1} parent=1 // pred_fallthru
      _
    // Predicated region
    $region54: #{tpu_custom_call.1} parent=1 // pred_check
      _
    $region55: #{tpu_custom_call.1} parent=1 // pred_check_branch
      %109 = sbr.rel (0) target = $region57
    $region56: #{tpu_custom_call.1} parent=1 // pred_region
      %110 = dma.done [#allocation6], 128
    $region57: #{tpu_custom_call.1} parent=1 // pred_fallthru
      _
    // Predicated region
    $region58: #{tpu_custom_call.1} parent=1 // pred_check
      _
    $region59: #{tpu_custom_call.1} parent=1 // pred_check_branch
      %112 = sbr.rel (0) target = $region61
    $region60: #{tpu_custom_call.1} parent=1 // pred_region
      %113 = dma.done [#allocation6], 256
    $region61: #{tpu_custom_call.1} parent=1 // pred_fallthru
      _
    // Predicated region
    $region62: #{tpu_custom_call.1} parent=1 // pred_check
      _
    $region63: #{tpu_custom_call.1} parent=1 // pred_check_branch
      %115 = sbr.rel (0) target = $region65
    $region64: #{tpu_custom_call.1} parent=1 // pred_region
      %116 = dma.done [#allocation9], 1024
    $region65: #{tpu_custom_call.1} parent=1 // pred_fallthru
      _
    // Predicated region
    $region66: #{tpu_custom_call.1} parent=1 // pred_check
      _
    $region67: #{tpu_custom_call.1} parent=1 // pred_check_branch
      %118 = sbr.rel (0) target = $region69
    $region68: #{tpu_custom_call.1} parent=1 // pred_region
      %119 = dma.done [#allocation9], 1024
    $region69: #{tpu_custom_call.1} parent=1 // pred_fallthru
      _
    // Predicated region
    $region70: #{tpu_custom_call.1} parent=1 // pred_check
      _
    $region71: #{tpu_custom_call.1} parent=1 // pred_check_branch
      %121 = sbr.rel (0) target = $region73
    $region72: #{tpu_custom_call.1} parent=1 // pred_region
      %122 = dma.done [#allocation12], 1024
    $region73: #{tpu_custom_call.1} parent=1 // pred_fallthru
      _
    %v124 = vld [vmem:[#allocation2] sm:$0xff]
    %v125 = vpack.c.bf16 %v124, %v124
    %v126 = vld [vmem:[#allocation5] sm:$0xff]
    %v127 = vpack.c.bf16 %v126, %v126
    %v128 = vld [vmem:[#allocation7] sm:$0xf]
    %v129 = vld [vmem:[#allocation7 + $0x4] sm:$0xf]
    %v130 = vld [vmem:[#allocation7 + $0x8] sm:$0xf]
    %v131 = vld [vmem:[#allocation7 + $0xc] sm:$0xf]
    %v132 = vld [vmem:[%s3] sm:$0xf]
    %vm133 = vcmask 64512
    %v135 = vsel %vm133, %v127, 0
    %vm137 = vcmask 1043456
    %v139 = vsel %vm137, %v132, 0
    %141 = vmatprep.subr.bf16.mxu0 0
    %142 = vmatpush1.bf16.msra.mxu0 0
    %143 = vmatprep.subr.bf16.mxu0 0
    %144 = vmatpush1.bf16.msra.mxu0 0
    %145 = vmatprep.subr.bf16.mxu0 0
    %146 = vmatpush1.bf16.msra.mxu0 0
    %147 = vmatprep.subr.bf16.mxu0 0
    %148 = vmatpush1.bf16.msra.mxu0 0
    %149 = vmatprep.subr.bf16.mxu0 0
    %150 = vmatpush1.bf16.msra.mxu0 0
    %151 = vmatprep.subr.bf16.mxu0 0
    %152 = vmatpush1.bf16.msra.mxu0 0
    %153 = vmatprep.subr.bf16.mxu0 0
    %154 = vmatpush1.bf16.msra.mxu0 0
    %155 = vmatprep.subr.bf16.mxu0 0
    %156 = vmatpush1.bf16.msra.mxu0 %v139
    %157 = vmatprep.subr.bf16.mxu0 0
    %158 = vmatpush2.bf16.msra.mxu0 0
    %159 = vmatprep.subr.bf16.mxu0 0
    %160 = vmatpush2.bf16.msra.mxu0 0
    %161 = vmatprep.subr.bf16.mxu0 0
    %162 = vmatpush2.bf16.msra.mxu0 0
    %163 = vmatprep.subr.bf16.mxu0 0
    %164 = vmatpush2.bf16.msra.mxu0 0
    %165 = vmatprep.subr.bf16.mxu0 0
    %166 = vmatpush2.bf16.msra.mxu0 0
    %167 = vmatprep.subr.bf16.mxu0 0
    %168 = vmatpush2.bf16.msra.mxu0 0
    %169 = vmatprep.subr.bf16.mxu0 0
    %170 = vmatpush2.bf16.msra.mxu0 0
    %171 = vmatprep.subr.bf16.mxu0 0
    %172 = vmatpush2.bf16.msra.mxu0 0
    %173 = vmatprep.mubr.bf16.mxu0 0
    %174 = vmatmul.mubr.bf16.gmra.mxu0 %v135
    %v175 = vpop.f32.mrf.mxu0
    %v176 = vadd.f32 0.0, %v175
    %v177 = vpop.f32.mrf.mxu0
    %v178 = vpop.f32.mrf.mxu0
    %v179 = vpop.f32.mrf.mxu0
    %180 = vdwg.mxu0
    %v185 = vunpack.c.l.b16 %v128
    %v186 = vunpack.c.l.b16 %v129
    %v187 = vunpack.c.l.b16 %v130
    %v188 = vunpack.c.l.b16 %v131
    %v189 = vpack.c.b16 %v186, %v185
    %v190 = vpack.c.b16 %v188, %v187
    %vm193 = vcmask 261120
    %v195 = vsel %vm193, %v125, 0
    %197 = vmatprep.subr.bf16.mxu0 0
    %198 = vmatpush1.bf16.msra.mxu0 0
    %199 = vmatprep.subr.bf16.mxu0 0
    %200 = vmatpush1.bf16.msra.mxu0 0
    %201 = vmatprep.subr.bf16.mxu0 0
    %202 = vmatpush1.bf16.msra.mxu0 0
    %203 = vmatprep.subr.bf16.mxu0 0
    %204 = vmatpush1.bf16.msra.mxu0 0
    %205 = vmatprep.subr.bf16.mxu0 0
    %206 = vmatpush1.bf16.msra.mxu0 0
    %207 = vmatprep.subr.bf16.mxu0 0
    %208 = vmatpush1.bf16.msra.mxu0 0
    %209 = vmatprep.subr.bf16.mxu0 0
    %210 = vmatpush1.bf16.msra.mxu0 %v190
    %211 = vmatprep.subr.bf16.mxu0 0
    %212 = vmatpush1.bf16.msra.mxu0 %v189
    %213 = vmatprep.subr.bf16.mxu0 0
    %214 = vmatpush2.bf16.msra.mxu0 0
    %215 = vmatprep.subr.bf16.mxu0 0
    %216 = vmatpush2.bf16.msra.mxu0 0
    %217 = vmatprep.subr.bf16.mxu0 0
    %218 = vmatpush2.bf16.msra.mxu0 0
    %219 = vmatprep.subr.bf16.mxu0 0
    %220 = vmatpush2.bf16.msra.mxu0 0
    %221 = vmatprep.subr.bf16.mxu0 0
    %222 = vmatpush2.bf16.msra.mxu0 0
    %223 = vmatprep.subr.bf16.mxu0 0
    %224 = vmatpush2.bf16.msra.mxu0 0
    %225 = vmatprep.subr.bf16.mxu0 0
    %226 = vmatpush2.bf16.msra.mxu0 0
    %227 = vmatprep.subr.bf16.mxu0 0
    %228 = vmatpush2.bf16.msra.mxu0 0
    %229 = vmatprep.mubr.bf16.mxu0 0
    %230 = vmatmul.mubr.bf16.gmra.mxu0 %v195
    %v231 = vpop.f32.mrf.mxu0
    %v232 = vadd.f32 %v176, %v231
    %v233 = vpop.f32.mrf.mxu0
    %v234 = vpop.f32.mrf.mxu0
    %v235 = vpop.f32.mrf.mxu0
    %236 = vdwg.mxu0
    %v237 = vld [vmem:[%s4] sm:$0x1]
    %v239 = vlaneseq
    %v240 = vshrl.u32 %v239, 7
    %v241 = vsub.s32 0, %v240
    %v242 = vrot.slane %v237, %v241
    %v244 = vadd.f32 %v232, %v242
    %v245 = vmax.f32 %v244, 0.0
    %v246 = vpack.c.bf16 %v245, %v245
    %v247 = vld [vmem:[#allocation8] sm:$0xf]
    %v248 = vld [vmem:[#allocation8 + $0x4] sm:$0xf]
    %v249 = vld [vmem:[#allocation8 + $0x8] sm:$0xf]
    %v250 = vld [vmem:[#allocation8 + $0xc] sm:$0xf]
    %v251 = vld [vmem:[#allocation8 + $0x10] sm:$0xf]
    %v252 = vld [vmem:[#allocation8 + $0x14] sm:$0xf]
    %v253 = vld [vmem:[#allocation8 + $0x18] sm:$0xf]
    %v254 = vld [vmem:[#allocation8 + $0x1c] sm:$0xf]
    %v255 = vld [vmem:[#allocation8 + $0x20] sm:$0xf]
    %v256 = vld [vmem:[#allocation8 + $0x24] sm:$0xf]
    %v257 = vld [vmem:[#allocation8 + $0x28] sm:$0xf]
    %v258 = vld [vmem:[#allocation8 + $0x2c] sm:$0xf]
    %v259 = vld [vmem:[#allocation8 + $0x30] sm:$0xf]
    %v260 = vld [vmem:[#allocation8 + $0x34] sm:$0xf]
    %v261 = vld [vmem:[#allocation8 + $0x38] sm:$0xf]
    %v262 = vld [vmem:[#allocation8 + $0x3c] sm:$0xf]
    %v263 = vld [vmem:[%s6] sm:$0x1]
    %v265 = vlaneseq
    %v266 = vshrl.u32 %v265, 7
    %v267 = vsub.s32 0, %v266
    %v268 = vrot.slane %v263, %v267
    %v286 = vunpack.c.l.b16 %v247
    %v287 = vunpack.c.l.b16 %v248
    %v288 = vunpack.c.l.b16 %v249
    %v289 = vunpack.c.l.b16 %v250
    %v290 = vunpack.c.l.b16 %v251
    %v291 = vunpack.c.l.b16 %v252
    %v292 = vunpack.c.l.b16 %v253
    %v293 = vunpack.c.l.b16 %v254
    %v294 = vunpack.c.l.b16 %v255
    %v295 = vunpack.c.l.b16 %v256
    %v296 = vunpack.c.l.b16 %v257
    %v297 = vunpack.c.l.b16 %v258
    %v298 = vunpack.c.l.b16 %v259
    %v299 = vunpack.c.l.b16 %v260
    %v300 = vunpack.c.l.b16 %v261
    %v301 = vunpack.c.l.b16 %v262
    %v302 = vpack.c.b16 %v287, %v286
    %v303 = vpack.c.b16 %v289, %v288
    %v304 = vpack.c.b16 %v291, %v290
    %v305 = vpack.c.b16 %v293, %v292
    %v306 = vpack.c.b16 %v295, %v294
    %v307 = vpack.c.b16 %v297, %v296
    %v308 = vpack.c.b16 %v299, %v298
    %v309 = vpack.c.b16 %v301, %v300
    %318 = vmatprep.subr.bf16.mxu0 0
    %319 = vmatpush1.bf16.msra.mxu0 %v309
    %320 = vmatprep.subr.bf16.mxu0 0
    %321 = vmatpush1.bf16.msra.mxu0 %v308
    %322 = vmatprep.subr.bf16.mxu0 0
    %323 = vmatpush1.bf16.msra.mxu0 %v307
    %324 = vmatprep.subr.bf16.mxu0 0
    %325 = vmatpush1.bf16.msra.mxu0 %v306
    %326 = vmatprep.subr.bf16.mxu0 0
    %327 = vmatpush1.bf16.msra.mxu0 %v305
    %328 = vmatprep.subr.bf16.mxu0 0
    %329 = vmatpush1.bf16.msra.mxu0 %v304
    %330 = vmatprep.subr.bf16.mxu0 0
    %331 = vmatpush1.bf16.msra.mxu0 %v303
    %332 = vmatprep.subr.bf16.mxu0 0
    %333 = vmatpush1.bf16.msra.mxu0 %v302
    %334 = vmatprep.subr.bf16.mxu0 0
    %335 = vmatpush2.bf16.msra.mxu0 0
    %336 = vmatprep.subr.bf16.mxu0 0
    %337 = vmatpush2.bf16.msra.mxu0 0
    %338 = vmatprep.subr.bf16.mxu0 0
    %339 = vmatpush2.bf16.msra.mxu0 0
    %340 = vmatprep.subr.bf16.mxu0 0
    %341 = vmatpush2.bf16.msra.mxu0 0
    %342 = vmatprep.subr.bf16.mxu0 0
    %343 = vmatpush2.bf16.msra.mxu0 0
    %344 = vmatprep.subr.bf16.mxu0 0
    %345 = vmatpush2.bf16.msra.mxu0 0
    %346 = vmatprep.subr.bf16.mxu0 0
    %347 = vmatpush2.bf16.msra.mxu0 0
    %348 = vmatprep.subr.bf16.mxu0 0
    %349 = vmatpush2.bf16.msra.mxu0 0
    %350 = vmatprep.mubr.bf16.mxu0 0
    %351 = vmatmul.mubr.bf16.gmra.mxu0 %v246
    %v352 = vpop.f32.mrf.mxu0
    %v353 = vadd.f32 %v268, %v352
    %v354 = vpop.f32.mrf.mxu0
    %v355 = vpop.f32.mrf.mxu0
    %v356 = vpop.f32.mrf.mxu0
    %357 = vdwg.mxu0
    %v358 = vmax.f32 %v353, 0.0
    %v359 = vpack.c.bf16 %v358, %v358
    %v360 = vld [vmem:[#allocation10] sm:$0xf]
    %v361 = vld [vmem:[#allocation10 + $0x4] sm:$0xf]
    %v362 = vld [vmem:[#allocation10 + $0x8] sm:$0xf]
    %v363 = vld [vmem:[#allocation10 + $0xc] sm:$0xf]
    %v364 = vld [vmem:[#allocation10 + $0x10] sm:$0xf]
    %v365 = vld [vmem:[#allocation10 + $0x14] sm:$0xf]
    %v366 = vld [vmem:[#allocation10 + $0x18] sm:$0xf]
    %v367 = vld [vmem:[#allocation10 + $0x1c] sm:$0xf]
    %v368 = vld [vmem:[#allocation10 + $0x20] sm:$0xf]
    %v369 = vld [vmem:[#allocation10 + $0x24] sm:$0xf]
    %v370 = vld [vmem:[#allocation10 + $0x28] sm:$0xf]
    %v371 = vld [vmem:[#allocation10 + $0x2c] sm:$0xf]
    %v372 = vld [vmem:[#allocation10 + $0x30] sm:$0xf]
    %v373 = vld [vmem:[#allocation10 + $0x34] sm:$0xf]
    %v374 = vld [vmem:[#allocation10 + $0x38] sm:$0xf]
    %v375 = vld [vmem:[#allocation10 + $0x3c] sm:$0xf]
    %v376 = vld [vmem:[%s8] sm:$0xf]
    %v378 = vsel %vm137, %v376, 0
    %380 = vmatprep.subr.bf16.mxu0 0
    %381 = vmatpush1.bf16.msra.mxu0 0
    %382 = vmatprep.subr.bf16.mxu0 0
    %383 = vmatpush1.bf16.msra.mxu0 0
    %384 = vmatprep.subr.bf16.mxu0 0
    %385 = vmatpush1.bf16.msra.mxu0 0
    %386 = vmatprep.subr.bf16.mxu0 0
    %387 = vmatpush1.bf16.msra.mxu0 0
    %388 = vmatprep.subr.bf16.mxu0 0
    %389 = vmatpush1.bf16.msra.mxu0 0
    %390 = vmatprep.subr.bf16.mxu0 0
    %391 = vmatpush1.bf16.msra.mxu0 0
    %392 = vmatprep.subr.bf16.mxu0 0
    %393 = vmatpush1.bf16.msra.mxu0 0
    %394 = vmatprep.subr.bf16.mxu0 0
    %395 = vmatpush1.bf16.msra.mxu0 %v378
    %396 = vmatprep.subr.bf16.mxu0 0
    %397 = vmatpush2.bf16.msra.mxu0 0
    %398 = vmatprep.subr.bf16.mxu0 0
    %399 = vmatpush2.bf16.msra.mxu0 0
    %400 = vmatprep.subr.bf16.mxu0 0
    %401 = vmatpush2.bf16.msra.mxu0 0
    %402 = vmatprep.subr.bf16.mxu0 0
    %403 = vmatpush2.bf16.msra.mxu0 0
    %404 = vmatprep.subr.bf16.mxu0 0
    %405 = vmatpush2.bf16.msra.mxu0 0
    %406 = vmatprep.subr.bf16.mxu0 0
    %407 = vmatpush2.bf16.msra.mxu0 0
    %408 = vmatprep.subr.bf16.mxu0 0
    %409 = vmatpush2.bf16.msra.mxu0 0
    %410 = vmatprep.subr.bf16.mxu0 0
    %411 = vmatpush2.bf16.msra.mxu0 0
    %412 = vmatprep.mubr.bf16.mxu0 0
    %413 = vmatmul.mubr.bf16.gmra.mxu0 %v135
    %v414 = vpop.f32.mrf.mxu0
    %v415 = vadd.f32 0.0, %v414
    %v416 = vpop.f32.mrf.mxu0
    %v417 = vpop.f32.mrf.mxu0
    %v418 = vpop.f32.mrf.mxu0
    %419 = vdwg.mxu0
    %v436 = vunpack.c.l.b16 %v360
    %v437 = vunpack.c.l.b16 %v361
    %v438 = vunpack.c.l.b16 %v362
    %v439 = vunpack.c.l.b16 %v363
    %v440 = vunpack.c.l.b16 %v364
    %v441 = vunpack.c.l.b16 %v365
    %v442 = vunpack.c.l.b16 %v366
    %v443 = vunpack.c.l.b16 %v367
    %v444 = vunpack.c.l.b16 %v368
    %v445 = vunpack.c.l.b16 %v369
    %v446 = vunpack.c.l.b16 %v370
    %v447 = vunpack.c.l.b16 %v371
    %v448 = vunpack.c.l.b16 %v372
    %v449 = vunpack.c.l.b16 %v373
    %v450 = vunpack.c.l.b16 %v374
    %v451 = vunpack.c.l.b16 %v375
    %v452 = vpack.c.b16 %v437, %v436
    %v453 = vpack.c.b16 %v439, %v438
    %v454 = vpack.c.b16 %v441, %v440
    %v455 = vpack.c.b16 %v443, %v442
    %v456 = vpack.c.b16 %v445, %v444
    %v457 = vpack.c.b16 %v447, %v446
    %v458 = vpack.c.b16 %v449, %v448
    %v459 = vpack.c.b16 %v451, %v450
    %468 = vmatprep.subr.bf16.mxu0 0
    %469 = vmatpush1.bf16.msra.mxu0 %v459
    %470 = vmatprep.subr.bf16.mxu0 0
    %471 = vmatpush1.bf16.msra.mxu0 %v458
    %472 = vmatprep.subr.bf16.mxu0 0
    %473 = vmatpush1.bf16.msra.mxu0 %v457
    %474 = vmatprep.subr.bf16.mxu0 0
    %475 = vmatpush1.bf16.msra.mxu0 %v456
    %476 = vmatprep.subr.bf16.mxu0 0
    %477 = vmatpush1.bf16.msra.mxu0 %v455
    %478 = vmatprep.subr.bf16.mxu0 0
    %479 = vmatpush1.bf16.msra.mxu0 %v454
    %480 = vmatprep.subr.bf16.mxu0 0
    %481 = vmatpush1.bf16.msra.mxu0 %v453
    %482 = vmatprep.subr.bf16.mxu0 0
    %483 = vmatpush1.bf16.msra.mxu0 %v452
    %484 = vmatprep.subr.bf16.mxu0 0
    %485 = vmatpush2.bf16.msra.mxu0 0
    %486 = vmatprep.subr.bf16.mxu0 0
    %487 = vmatpush2.bf16.msra.mxu0 0
    %488 = vmatprep.subr.bf16.mxu0 0
    %489 = vmatpush2.bf16.msra.mxu0 0
    %490 = vmatprep.subr.bf16.mxu0 0
    %491 = vmatpush2.bf16.msra.mxu0 0
    %492 = vmatprep.subr.bf16.mxu0 0
    %493 = vmatpush2.bf16.msra.mxu0 0
    %494 = vmatprep.subr.bf16.mxu0 0
    %495 = vmatpush2.bf16.msra.mxu0 0
    %496 = vmatprep.subr.bf16.mxu0 0
    %497 = vmatpush2.bf16.msra.mxu0 0
    %498 = vmatprep.subr.bf16.mxu0 0
    %499 = vmatpush2.bf16.msra.mxu0 0
    %500 = vmatprep.mubr.bf16.mxu0 0
    %501 = vmatmul.mubr.bf16.gmra.mxu0 %v359
    %v502 = vpop.f32.mrf.mxu0
    %v503 = vadd.f32 %v415, %v502
    %v504 = vpop.f32.mrf.mxu0
    %v505 = vpop.f32.mrf.mxu0
    %v506 = vpop.f32.mrf.mxu0
    %507 = vdwg.mxu0
    %v508 = vld [vmem:[%s9] sm:$0x1]
    %v510 = vlaneseq
    %v511 = vshrl.u32 %v510, 7
    %v512 = vsub.s32 0, %v511
    %v513 = vrot.slane %v508, %v512
    %v515 = vadd.f32 %v503, %v513
    %v516 = vmax.f32 %v515, 0.0
    %v517 = vpack.c.bf16 %v516, %v516
    %v518 = vld [vmem:[#allocation11] sm:$0xf]
    %v519 = vld [vmem:[#allocation11 + $0x4] sm:$0xf]
    %v520 = vld [vmem:[#allocation11 + $0x8] sm:$0xf]
    %v521 = vld [vmem:[#allocation11 + $0xc] sm:$0xf]
    %v522 = vld [vmem:[#allocation11 + $0x10] sm:$0xf]
    %v523 = vld [vmem:[#allocation11 + $0x14] sm:$0xf]
    %v524 = vld [vmem:[#allocation11 + $0x18] sm:$0xf]
    %v525 = vld [vmem:[#allocation11 + $0x1c] sm:$0xf]
    %v526 = vld [vmem:[#allocation11 + $0x20] sm:$0xf]
    %v527 = vld [vmem:[#allocation11 + $0x24] sm:$0xf]
    %v528 = vld [vmem:[#allocation11 + $0x28] sm:$0xf]
    %v529 = vld [vmem:[#allocation11 + $0x2c] sm:$0xf]
    %v530 = vld [vmem:[#allocation11 + $0x30] sm:$0xf]
    %v531 = vld [vmem:[#allocation11 + $0x34] sm:$0xf]
    %v532 = vld [vmem:[#allocation11 + $0x38] sm:$0xf]
    %v533 = vld [vmem:[#allocation11 + $0x3c] sm:$0xf]
    %v534 = vld [vmem:[%s11] sm:$0x1]
    %v536 = vlaneseq
    %v537 = vshrl.u32 %v536, 7
    %v538 = vsub.s32 0, %v537
    %v539 = vrot.slane %v534, %v538
    %v557 = vunpack.c.l.b16 %v518
    %v558 = vunpack.c.l.b16 %v519
    %v559 = vunpack.c.l.b16 %v520
    %v560 = vunpack.c.l.b16 %v521
    %v561 = vunpack.c.l.b16 %v522
    %v562 = vunpack.c.l.b16 %v523
    %v563 = vunpack.c.l.b16 %v524
    %v564 = vunpack.c.l.b16 %v525
    %v565 = vunpack.c.l.b16 %v526
    %v566 = vunpack.c.l.b16 %v527
    %v567 = vunpack.c.l.b16 %v528
    %v568 = vunpack.c.l.b16 %v529
    %v569 = vunpack.c.l.b16 %v530
    %v570 = vunpack.c.l.b16 %v531
    %v571 = vunpack.c.l.b16 %v532
    %v572 = vunpack.c.l.b16 %v533
    %v573 = vpack.c.b16 %v558, %v557
    %v574 = vpack.c.b16 %v560, %v559
    %v575 = vpack.c.b16 %v562, %v561
    %v576 = vpack.c.b16 %v564, %v563
    %v577 = vpack.c.b16 %v566, %v565
    %v578 = vpack.c.b16 %v568, %v567
    %v579 = vpack.c.b16 %v570, %v569
    %v580 = vpack.c.b16 %v572, %v571
    %589 = vmatprep.subr.bf16.mxu0 0
    %590 = vmatpush1.bf16.msra.mxu0 %v580
    %591 = vmatprep.subr.bf16.mxu0 0
    %592 = vmatpush1.bf16.msra.mxu0 %v579
    %593 = vmatprep.subr.bf16.mxu0 0
    %594 = vmatpush1.bf16.msra.mxu0 %v578
    %595 = vmatprep.subr.bf16.mxu0 0
    %596 = vmatpush1.bf16.msra.mxu0 %v577
    %597 = vmatprep.subr.bf16.mxu0 0
    %598 = vmatpush1.bf16.msra.mxu0 %v576
    %599 = vmatprep.subr.bf16.mxu0 0
    %600 = vmatpush1.bf16.msra.mxu0 %v575
    %601 = vmatprep.subr.bf16.mxu0 0
    %602 = vmatpush1.bf16.msra.mxu0 %v574
    %603 = vmatprep.subr.bf16.mxu0 0
    %604 = vmatpush1.bf16.msra.mxu0 %v573
    %605 = vmatprep.subr.bf16.mxu0 0
    %606 = vmatpush2.bf16.msra.mxu0 0
    %607 = vmatprep.subr.bf16.mxu0 0
    %608 = vmatpush2.bf16.msra.mxu0 0
    %609 = vmatprep.subr.bf16.mxu0 0
    %610 = vmatpush2.bf16.msra.mxu0 0
    %611 = vmatprep.subr.bf16.mxu0 0
    %612 = vmatpush2.bf16.msra.mxu0 0
    %613 = vmatprep.subr.bf16.mxu0 0
    %614 = vmatpush2.bf16.msra.mxu0 0
    %615 = vmatprep.subr.bf16.mxu0 0
    %616 = vmatpush2.bf16.msra.mxu0 0
    %617 = vmatprep.subr.bf16.mxu0 0
    %618 = vmatpush2.bf16.msra.mxu0 0
    %619 = vmatprep.subr.bf16.mxu0 0
    %620 = vmatpush2.bf16.msra.mxu0 0
    %621 = vmatprep.mubr.bf16.mxu0 0
    %622 = vmatmul.mubr.bf16.gmra.mxu0 %v517
    %v623 = vpop.f32.mrf.mxu0
    %v624 = vadd.f32 %v539, %v623
    %v625 = vpop.f32.mrf.mxu0
    %v626 = vpop.f32.mrf.mxu0
    %v627 = vpop.f32.mrf.mxu0
    %628 = vdwg.mxu0
    %v629 = vsub.f32 0.0, %v624
    %v630 = vmul.f32 %v629, 1.442695
    %v631 = vpow.pop %v630
    %v632 = vadd.f32 %v631, 1.0
    %v633 = vrcp.pop %v632
    %v634 = vpack.c.bf16 %v633, %v633
    %635 = vst [vmem:[#allocation13] sm:$0xf] %v634
    %636 = vst [vmem:[#allocation14] sm:$0xf] %v359
    // Predicated region
    $region74: #{tpu_custom_call.1} parent=1 // pred_check
      _
    $region75: #{tpu_custom_call.1} parent=1 // pred_check_branch
      %638 = sbr.rel (0) target = $region77
    $region76: #{tpu_custom_call.1} parent=1 // pred_region
      %s640 = ssub.s32 64, 64
      %641 = vsyncadd [#allocation4], %s640
      %s643 = sshll.u32 [#allocation13], 4
      %s644 = int_to_ptr.vmem [resolvable:$true] %s643
      %646 = dma.vmem_to_hbm [thread:$0]  %s644, 64, %s12, [#allocation4]
    $region77: #{tpu_custom_call.1} parent=1 // pred_fallthru
      _
    // Predicated region
    $region78: #{tpu_custom_call.1} parent=1 // pred_check
      _
    $region79: #{tpu_custom_call.1} parent=1 // pred_check_branch
      %648 = sbr.rel (0) target = $region81
    $region80: #{tpu_custom_call.1} parent=1 // pred_region
      %s650 = ssub.s32 64, 64
      %651 = vsyncadd [#allocation15], %s650
      %s653 = sshll.u32 [#allocation14], 4
      %s654 = int_to_ptr.vmem [resolvable:$true] %s653
      %656 = dma.vmem_to_hbm [thread:$0]  %s654, 64, %s13, [#allocation15]
    $region81: #{tpu_custom_call.1} parent=1 // pred_fallthru
      _
    // Predicated region
    $region82: #{tpu_custom_call.1} parent=1 // pred_check
      _
    $region83: #{tpu_custom_call.1} parent=1 // pred_check_branch
      %658 = sbr.rel (0) target = $region85
    $region84: #{tpu_custom_call.1} parent=1 // pred_region
      %659 = dma.done [#allocation4], 64
    $region85: #{tpu_custom_call.1} parent=1 // pred_fallthru
      _
    // Predicated region
    $region86: #{tpu_custom_call.1} parent=1 // pred_check
      _
    $region87: #{tpu_custom_call.1} parent=1 // pred_check_branch
      %661 = sbr.rel (0) target = $region89
    $region88: #{tpu_custom_call.1} parent=1 // pred_region
      %662 = dma.done [#allocation15], 64
    $region89: #{tpu_custom_call.1} parent=1 // pred_fallthru
      _
    %663 = vsyncpa [#allocation3], 1
    %664 = vsyncpa [#allocation6], 1
    %665 = vsyncpa [#allocation9], 1
    %666 = vsyncpa [#allocation12], 1
    %667 = vsyncpa [#allocation4], 1
    %668 = vsyncpa [#allocation15], 1

// kernel: tpu_custom_call.1
$region0: #{tpu_custom_call.1}
  #allocation0 [shape = 'u32[]', space=smem, size = 0x4, offset = 0x4, fixed_abs, tag = 'smem constant byte address 0x4 - core index']
  #allocation1 [shape = 'u32[144,128]{1,0:T(1,128)}', space=vmem, size = 0x12000, scoped, tag = 'internal scratch']
  %s0 = inlined_call_operand.hbm [shape: f32[8,32], index: 0, kind: input, shape index: {}]
  %s1 = inlined_call_operand.hbm [shape: f32[8,8], index: 1, kind: input, shape index: {}]
  %s2 = inlined_call_operand.hbm [shape: bf16[32,128], index: 2, kind: input, shape index: {}]
  %s3 = inlined_call_operand.vmem [shape: bf16[8,128], index: 3, kind: input, shape index: {}]
  %s4 = inlined_call_operand.vmem [shape: f32[1,128], index: 4, kind: input, shape index: {}]
  %s5 = inlined_call_operand.hbm [shape: bf16[128,128], index: 5, kind: input, shape index: {}]
  %s6 = inlined_call_operand.vmem [shape: f32[1,128], index: 6, kind: input, shape index: {}]
  %s7 = inlined_call_operand.hbm [shape: bf16[128,128], index: 7, kind: input, shape index: {}]
  %s8 = inlined_call_operand.vmem [shape: bf16[8,128], index: 8, kind: input, shape index: {}]
  %s9 = inlined_call_operand.vmem [shape: f32[1,128], index: 9, kind: input, shape index: {}]
  %s10 = inlined_call_operand.hbm [shape: bf16[128,128], index: 10, kind: input, shape index: {}]
  %s11 = inlined_call_operand.vmem [shape: f32[1,128], index: 11, kind: input, shape index: {}]
  %s12 = inlined_call_operand.hbm [shape: bf16[8,128], index: 12, kind: output, shape index: {0}]
  %s13 = inlined_call_operand.hbm [shape: bf16[8,128], index: 13, kind: output, shape index: {1}]
  %14 = xla_tuple %s12, %s13
  %s15 = sld [smem:[#allocation0]]
  $region90: #{tpu_custom_call.1} parent=0
    _
  %s17 = ssub.s32 1, %s15
  %s18 = scalar_select 0, %s17, %s15
  $region1: #{tpu_custom_call.1} parent=0
    #allocation2 [shape = 'u8[4096]{0}', space=vmem, size = 0x1000, scoped, tag = 'input window, operand 0, single buffered']
    #allocation3 [shape = 's32[1]{0}', space=sflag, size = 0x4, scoped, tag = 'scoped memory for tpu_custom_call.1']
    #allocation4 [shape = 's32[1]{0}', space=sflag, size = 0x4, scoped, tag = 'scoped memory for tpu_custom_call.1']
    #allocation5 [shape = 'u8[4096]{0}', space=vmem, size = 0x1000, scoped, tag = 'input window, operand 1, single buffered']
    #allocation6 [shape = 's32[1]{0}', space=sflag, size = 0x4, scoped, tag = 'scoped memory for tpu_custom_call.1']
    #allocation7 [shape = 'u8[8192]{0}', space=vmem, size = 0x2000, scoped, tag = 'input window, operand 2, single buffered']
    #allocation8 [shape = 'u8[32768]{0}', space=vmem, size = 0x8000, scoped, tag = 'input window, operand 5, single buffered']
    #allocation9 [shape = 's32[1]{0}', space=sflag, size = 0x4, scoped, tag = 'scoped memory for tpu_custom_call.1']
    #allocation10 [shape = 'u8[32768]{0}', space=vmem, size = 0x8000, scoped, tag = 'input window, operand 7, single buffered']
    #allocation11 [shape = 'u8[32768]{0}', space=vmem, size = 0x8000, scoped, tag = 'input window, operand 10, single buffered']
    #allocation12 [shape = 's32[1]{0}', space=sflag, size = 0x4, scoped, tag = 'scoped memory for tpu_custom_call.1']
    #allocation13 [shape = 'u8[2048]{0}', space=vmem, size = 0x800, scoped, tag = 'output window, operand 0, single buffered']
    #allocation14 [shape = 'u8[2048]{0}', space=vmem, size = 0x800, scoped, tag = 'output window, operand 1, single buffered']
    #allocation15 [shape = 's32[1]{0}', space=sflag, size = 0x4, scoped, tag = 'scoped memory for tpu_custom_call.1']
    %19 = vsyncpa [#allocation3], 0
    %20 = vsyncpa [#allocation6], 0
    %21 = vsyncpa [#allocation9], 0
    %22 = vsyncpa [#allocation12], 0
    %23 = vsyncpa [#allocation4], 0
    %24 = vsyncpa [#allocation15], 0
    // Predicated region
    $region2: #{tpu_custom_call.1} parent=1 // pred_check
      _
    $region3: #{tpu_custom_call.1} parent=1 // pred_check_branch
      %26 = sbr.rel (0) target = $region5
    $region4: #{tpu_custom_call.1} parent=1 // pred_region
      %s28 = ssub.s32 128, 128
      %29 = vsyncadd [#allocation3], %s28
      %s31 = sshll.u32 [#allocation2], 4
      %s32 = int_to_ptr.vmem [resolvable:$true] %s31
      %34 = dma.hbm_to_vmem [thread:$0]  %s0, 128, %s32, [#allocation3]
    $region5: #{tpu_custom_call.1} parent=1 // pred_fallthru
      _
    // Predicated region
    $region6: #{tpu_custom_call.1} parent=1 // pred_check
      _
    $region7: #{tpu_custom_call.1} parent=1 // pred_check_branch
      %36 = sbr.rel (0) target = $region9
    $region8: #{tpu_custom_call.1} parent=1 // pred_region
      %s38 = ssub.s32 128, 128
      %39 = vsyncadd [#allocation6], %s38
      %s41 = sshll.u32 [#allocation5], 4
      %s42 = int_to_ptr.vmem [resolvable:$true] %s41
      %44 = dma.hbm_to_vmem [thread:$0]  %s1, 128, %s42, [#allocation6]
    $region9: #{tpu_custom_call.1} parent=1 // pred_fallthru
      _
    // Predicated region
    $region10: #{tpu_custom_call.1} parent=1 // pred_check
      _
    $region11: #{tpu_custom_call.1} parent=1 // pred_check_branch
      %46 = sbr.rel (0) target = $region13
    $region12: #{tpu_custom_call.1} parent=1 // pred_region
      %s48 = ssub.s32 256, 256
      %49 = vsyncadd [#allocation6], %s48
      %s50 = sshll.u32 [#allocation7], 4
      %s51 = int_to_ptr.vmem [resolvable:$true] %s50
      %56 = dma.hbm_to_vmem [thread:$0]  %s2, 256, %s51, [#allocation6], 64, 64, 4
    $region13: #{tpu_custom_call.1} parent=1 // pred_fallthru
      _
    // Predicated region
    $region14: #{tpu_custom_call.1} parent=1 // pred_check
      _
    $region15: #{tpu_custom_call.1} parent=1 // pred_check_branch
      %58 = sbr.rel (0) target = $region17
    $region16: #{tpu_custom_call.1} parent=1 // pred_region
      _
    $region17: #{tpu_custom_call.1} parent=1 // pred_fallthru
      _
    // Predicated region
    $region18: #{tpu_custom_call.1} parent=1 // pred_check
      _
    $region19: #{tpu_custom_call.1} parent=1 // pred_check_branch
      %60 = sbr.rel (0) target = $region21
    $region20: #{tpu_custom_call.1} parent=1 // pred_region
      _
    $region21: #{tpu_custom_call.1} parent=1 // pred_fallthru
      _
    // Predicated region
    $region22: #{tpu_custom_call.1} parent=1 // pred_check
      _
    $region23: #{tpu_custom_call.1} parent=1 // pred_check_branch
      %62 = sbr.rel (0) target = $region25
    $region24: #{tpu_custom_call.1} parent=1 // pred_region
      %s64 = ssub.s32 1024, 1024
      %65 = vsyncadd [#allocation9], %s64
      %s66 = sshll.u32 [#allocation8], 4
      %s67 = int_to_ptr.vmem [resolvable:$true] %s66
      %72 = dma.hbm_to_vmem [thread:$0]  %s5, 1024, %s67, [#allocation9], 64, 64, 4
    $region25: #{tpu_custom_call.1} parent=1 // pred_fallthru
      _
    // Predicated region
    $region26: #{tpu_custom_call.1} parent=1 // pred_check
      _
    $region27: #{tpu_custom_call.1} parent=1 // pred_check_branch
      %74 = sbr.rel (0) target = $region29
    $region28: #{tpu_custom_call.1} parent=1 // pred_region
      _
    $region29: #{tpu_custom_call.1} parent=1 // pred_fallthru
      _
    // Predicated region
    $region30: #{tpu_custom_call.1} parent=1 // pred_check
      _
    $region31: #{tpu_custom_call.1} parent=1 // pred_check_branch
      %76 = sbr.rel (0) target = $region33
    $region32: #{tpu_custom_call.1} parent=1 // pred_region
      %s78 = ssub.s32 1024, 1024
      %79 = vsyncadd [#allocation9], %s78
      %s80 = sshll.u32 [#allocation10], 4
      %s81 = int_to_ptr.vmem [resolvable:$true] %s80
      %86 = dma.hbm_to_vmem [thread:$0]  %s7, 1024, %s81, [#allocation9], 64, 64, 4
    $region33: #{tpu_custom_call.1} parent=1 // pred_fallthru
      _
    // Predicated region
    $region34: #{tpu_custom_call.1} parent=1 // pred_check
      _
    $region35: #{tpu_custom_call.1} parent=1 // pred_check_branch
      %88 = sbr.rel (0) target = $region37
    $region36: #{tpu_custom_call.1} parent=1 // pred_region
      _
    $region37: #{tpu_custom_call.1} parent=1 // pred_fallthru
      _
    // Predicated region
    $region38: #{tpu_custom_call.1} parent=1 // pred_check
      _
    $region39: #{tpu_custom_call.1} parent=1 // pred_check_branch
      %90 = sbr.rel (0) target = $region41
    $region40: #{tpu_custom_call.1} parent=1 // pred_region
      _
    $region41: #{tpu_custom_call.1} parent=1 // pred_fallthru
      _
    // Predicated region
    $region42: #{tpu_custom_call.1} parent=1 // pred_check
      _
    $region43: #{tpu_custom_call.1} parent=1 // pred_check_branch
      %92 = sbr.rel (0) target = $region45
    $region44: #{tpu_custom_call.1} parent=1 // pred_region
      %s94 = ssub.s32 1024, 1024
      %95 = vsyncadd [#allocation12], %s94
      %s96 = sshll.u32 [#allocation11], 4
      %s97 = int_to_ptr.vmem [resolvable:$true] %s96
      %102 = dma.hbm_to_vmem [thread:$0]  %s10, 1024, %s97, [#allocation12], 64, 64, 4
    $region45: #{tpu_custom_call.1} parent=1 // pred_fallthru
      _
    // Predicated region
    $region46: #{tpu_custom_call.1} parent=1 // pred_check
      _
    $region47: #{tpu_custom_call.1} parent=1 // pred_check_branch
      %104 = sbr.rel (0) target = $region49
    $region48: #{tpu_custom_call.1} parent=1 // pred_region
      _
    $region49: #{tpu_custom_call.1} parent=1 // pred_fallthru
      _
    // Predicated region
    $region50: #{tpu_custom_call.1} parent=1 // pred_check
      _
    $region51: #{tpu_custom_call.1} parent=1 // pred_check_branch
      %106 = sbr.rel (0) target = $region53
    $region52: #{tpu_custom_call.1} parent=1 // pred_region
      %107 = dma.done [#allocation3], 128
    $region53: #{tpu_custom_call.1} parent=1 // pred_fallthru
      _
    // Predicated region
    $region54: #{tpu_custom_call.1} parent=1 // pred_check
      _
    $region55: #{tpu_custom_call.1} parent=1 // pred_check_branch
      %109 = sbr.rel (0) target = $region57
    $region56: #{tpu_custom_call.1} parent=1 // pred_region
      %110 = dma.done [#allocation6], 128
    $region57: #{tpu_custom_call.1} parent=1 // pred_fallthru
      _
    // Predicated region
    $region58: #{tpu_custom_call.1} parent=1 // pred_check
      _
    $region59: #{tpu_custom_call.1} parent=1 // pred_check_branch
      %112 = sbr.rel (0) target = $region61
    $region60: #{tpu_custom_call.1} parent=1 // pred_region
      %113 = dma.done [#allocation6], 256
    $region61: #{tpu_custom_call.1} parent=1 // pred_fallthru
      _
    // Predicated region
    $region62: #{tpu_custom_call.1} parent=1 // pred_check
      _
    $region63: #{tpu_custom_call.1} parent=1 // pred_check_branch
      %115 = sbr.rel (0) target = $region65
    $region64: #{tpu_custom_call.1} parent=1 // pred_region
      %116 = dma.done [#allocation9], 1024
    $region65: #{tpu_custom_call.1} parent=1 // pred_fallthru
      _
    // Predicated region
    $region66: #{tpu_custom_call.1} parent=1 // pred_check
      _
    $region67: #{tpu_custom_call.1} parent=1 // pred_check_branch
      %118 = sbr.rel (0) target = $region69
    $region68: #{tpu_custom_call.1} parent=1 // pred_region
      %119 = dma.done [#allocation9], 1024
    $region69: #{tpu_custom_call.1} parent=1 // pred_fallthru
      _
    // Predicated region
    $region70: #{tpu_custom_call.1} parent=1 // pred_check
      _
    $region71: #{tpu_custom_call.1} parent=1 // pred_check_branch
      %121 = sbr.rel (0) target = $region73
    $region72: #{tpu_custom_call.1} parent=1 // pred_region
      %122 = dma.done [#allocation12], 1024
    $region73: #{tpu_custom_call.1} parent=1 // pred_fallthru
      _
    %v124 = vld [vmem:[#allocation2] sm:$0xff]
    %v125 = vpack.c.bf16 %v124, %v124
    %v126 = vld [vmem:[#allocation5] sm:$0xff]
    %v127 = vpack.c.bf16 %v126, %v126
    %v128 = vld [vmem:[#allocation7] sm:$0xf]
    %v129 = vld [vmem:[#allocation7 + $0x4] sm:$0xf]
    %v130 = vld [vmem:[#allocation7 + $0x8] sm:$0xf]
    %v131 = vld [vmem:[#allocation7 + $0xc] sm:$0xf]
    %v132 = vld [vmem:[%s3] sm:$0xf]
    %vm133 = vcmask 64512
    %v135 = vsel %vm133, %v127, 0
    %vm137 = vcmask 1043456
    %v139 = vsel %vm137, %v132, 0
    %141 = vmatprep.subr.bf16.mxu0 0
    %142 = vmatpush1.bf16.msra.mxu0 0
    %143 = vmatprep.subr.bf16.mxu0 0
    %144 = vmatpush1.bf16.msra.mxu0 0
    %145 = vmatprep.subr.bf16.mxu0 0
    %146 = vmatpush1.bf16.msra.mxu0 0
    %147 = vmatprep.subr.bf16.mxu0 0
    %148 = vmatpush1.bf16.msra.mxu0 0
    %149 = vmatprep.subr.bf16.mxu0 0
    %150 = vmatpush1.bf16.msra.mxu0 0
    %151 = vmatprep.subr.bf16.mxu0 0
    %152 = vmatpush1.bf16.msra.mxu0 0
    %153 = vmatprep.subr.bf16.mxu0 0
    %154 = vmatpush1.bf16.msra.mxu0 0
    %155 = vmatprep.subr.bf16.mxu0 0
    %156 = vmatpush1.bf16.msra.mxu0 %v139
    %157 = vmatprep.subr.bf16.mxu0 0
    %158 = vmatpush2.bf16.msra.mxu0 0
    %159 = vmatprep.subr.bf16.mxu0 0
    %160 = vmatpush2.bf16.msra.mxu0 0
    %161 = vmatprep.subr.bf16.mxu0 0
    %162 = vmatpush2.bf16.msra.mxu0 0
    %163 = vmatprep.subr.bf16.mxu0 0
    %164 = vmatpush2.bf16.msra.mxu0 0
    %165 = vmatprep.subr.bf16.mxu0 0
    %166 = vmatpush2.bf16.msra.mxu0 0
    %167 = vmatprep.subr.bf16.mxu0 0
    %168 = vmatpush2.bf16.msra.mxu0 0
    %169 = vmatprep.subr.bf16.mxu0 0
    %170 = vmatpush2.bf16.msra.mxu0 0
    %171 = vmatprep.subr.bf16.mxu0 0
    %172 = vmatpush2.bf16.msra.mxu0 0
    %173 = vmatprep.mubr.bf16.mxu0 0
    %174 = vmatmul.mubr.bf16.gmra.mxu0 %v135
    %v175 = vpop.f32.mrf.mxu0
    %v176 = vadd.f32 0.0, %v175
    %v177 = vpop.f32.mrf.mxu0
    %v178 = vpop.f32.mrf.mxu0
    %v179 = vpop.f32.mrf.mxu0
    %180 = vdwg.mxu0
    %v185 = vunpack.c.l.b16 %v128
    %v186 = vunpack.c.l.b16 %v129
    %v187 = vunpack.c.l.b16 %v130
    %v188 = vunpack.c.l.b16 %v131
    %v189 = vpack.c.b16 %v186, %v185
    %v190 = vpack.c.b16 %v188, %v187
    %vm193 = vcmask 261120
    %v195 = vsel %vm193, %v125, 0
    %197 = vmatprep.subr.bf16.mxu0 0
    %198 = vmatpush1.bf16.msra.mxu0 0
    %199 = vmatprep.subr.bf16.mxu0 0
    %200 = vmatpush1.bf16.msra.mxu0 0
    %201 = vmatprep.subr.bf16.mxu0 0
    %202 = vmatpush1.bf16.msra.mxu0 0
    %203 = vmatprep.subr.bf16.mxu0 0
    %204 = vmatpush1.bf16.msra.mxu0 0
    %205 = vmatprep.subr.bf16.mxu0 0
    %206 = vmatpush1.bf16.msra.mxu0 0
    %207 = vmatprep.subr.bf16.mxu0 0
    %208 = vmatpush1.bf16.msra.mxu0 0
    %209 = vmatprep.subr.bf16.mxu0 0
    %210 = vmatpush1.bf16.msra.mxu0 %v190
    %211 = vmatprep.subr.bf16.mxu0 0
    %212 = vmatpush1.bf16.msra.mxu0 %v189
    %213 = vmatprep.subr.bf16.mxu0 0
    %214 = vmatpush2.bf16.msra.mxu0 0
    %215 = vmatprep.subr.bf16.mxu0 0
    %216 = vmatpush2.bf16.msra.mxu0 0
    %217 = vmatprep.subr.bf16.mxu0 0
    %218 = vmatpush2.bf16.msra.mxu0 0
    %219 = vmatprep.subr.bf16.mxu0 0
    %220 = vmatpush2.bf16.msra.mxu0 0
    %221 = vmatprep.subr.bf16.mxu0 0
    %222 = vmatpush2.bf16.msra.mxu0 0
    %223 = vmatprep.subr.bf16.mxu0 0
    %224 = vmatpush2.bf16.msra.mxu0 0
    %225 = vmatprep.subr.bf16.mxu0 0
    %226 = vmatpush2.bf16.msra.mxu0 0
    %227 = vmatprep.subr.bf16.mxu0 0
    %228 = vmatpush2.bf16.msra.mxu0 0
    %229 = vmatprep.mubr.bf16.mxu0 0
    %230 = vmatmul.mubr.bf16.gmra.mxu0 %v195
    %v231 = vpop.f32.mrf.mxu0
    %v232 = vadd.f32 %v176, %v231
    %v233 = vpop.f32.mrf.mxu0
    %v234 = vpop.f32.mrf.mxu0
    %v235 = vpop.f32.mrf.mxu0
    %236 = vdwg.mxu0
    %v237 = vld [vmem:[%s4] sm:$0x1]
    %v239 = vlaneseq
    %v240 = vshrl.u32 %v239, 7
    %v241 = vsub.s32 0, %v240
    %v242 = vrot.slane %v237, %v241
    %v244 = vadd.f32 %v232, %v242
    %v245 = vmax.f32 %v244, 0.0
    %v246 = vpack.c.bf16 %v245, %v245
    %v247 = vld [vmem:[#allocation8] sm:$0xf]
    %v248 = vld [vmem:[#allocation8 + $0x4] sm:$0xf]
    %v249 = vld [vmem:[#allocation8 + $0x8] sm:$0xf]
    %v250 = vld [vmem:[#allocation8 + $0xc] sm:$0xf]
    %v251 = vld [vmem:[#allocation8 + $0x10] sm:$0xf]
    %v252 = vld [vmem:[#allocation8 + $0x14] sm:$0xf]
    %v253 = vld [vmem:[#allocation8 + $0x18] sm:$0xf]
    %v254 = vld [vmem:[#allocation8 + $0x1c] sm:$0xf]
    %v255 = vld [vmem:[#allocation8 + $0x20] sm:$0xf]
    %v256 = vld [vmem:[#allocation8 + $0x24] sm:$0xf]
    %v257 = vld [vmem:[#allocation8 + $0x28] sm:$0xf]
    %v258 = vld [vmem:[#allocation8 + $0x2c] sm:$0xf]
    %v259 = vld [vmem:[#allocation8 + $0x30] sm:$0xf]
    %v260 = vld [vmem:[#allocation8 + $0x34] sm:$0xf]
    %v261 = vld [vmem:[#allocation8 + $0x38] sm:$0xf]
    %v262 = vld [vmem:[#allocation8 + $0x3c] sm:$0xf]
    %v263 = vld [vmem:[%s6] sm:$0x1]
    %v265 = vlaneseq
    %v266 = vshrl.u32 %v265, 7
    %v267 = vsub.s32 0, %v266
    %v268 = vrot.slane %v263, %v267
    %v286 = vunpack.c.l.b16 %v247
    %v287 = vunpack.c.l.b16 %v248
    %v288 = vunpack.c.l.b16 %v249
    %v289 = vunpack.c.l.b16 %v250
    %v290 = vunpack.c.l.b16 %v251
    %v291 = vunpack.c.l.b16 %v252
    %v292 = vunpack.c.l.b16 %v253
    %v293 = vunpack.c.l.b16 %v254
    %v294 = vunpack.c.l.b16 %v255
    %v295 = vunpack.c.l.b16 %v256
    %v296 = vunpack.c.l.b16 %v257
    %v297 = vunpack.c.l.b16 %v258
    %v298 = vunpack.c.l.b16 %v259
    %v299 = vunpack.c.l.b16 %v260
    %v300 = vunpack.c.l.b16 %v261
    %v301 = vunpack.c.l.b16 %v262
    %v302 = vpack.c.b16 %v287, %v286
    %v303 = vpack.c.b16 %v289, %v288
    %v304 = vpack.c.b16 %v291, %v290
    %v305 = vpack.c.b16 %v293, %v292
    %v306 = vpack.c.b16 %v295, %v294
    %v307 = vpack.c.b16 %v297, %v296
    %v308 = vpack.c.b16 %v299, %v298
    %v309 = vpack.c.b16 %v301, %v300
    %318 = vmatprep.subr.bf16.mxu0 0
    %319 = vmatpush1.bf16.msra.mxu0 %v309
    %320 = vmatprep.subr.bf16.mxu0 0
    %321 = vmatpush1.bf16.msra.mxu0 %v308
    %322 = vmatprep.subr.bf16.mxu0 0
    %323 = vmatpush1.bf16.msra.mxu0 %v307
    %324 = vmatprep.subr.bf16.mxu0 0
    %325 = vmatpush1.bf16.msra.mxu0 %v306
    %326 = vmatprep.subr.bf16.mxu0 0
    %327 = vmatpush1.bf16.msra.mxu0 %v305
    %328 = vmatprep.subr.bf16.mxu0 0
    %329 = vmatpush1.bf16.msra.mxu0 %v304
    %330 = vmatprep.subr.bf16.mxu0 0
    %331 = vmatpush1.bf16.msra.mxu0 %v303
    %332 = vmatprep.subr.bf16.mxu0 0
    %333 = vmatpush1.bf16.msra.mxu0 %v302
    %334 = vmatprep.subr.bf16.mxu0 0
    %335 = vmatpush2.bf16.msra.mxu0 0
    %336 = vmatprep.subr.bf16.mxu0 0
    %337 = vmatpush2.bf16.msra.mxu0 0
    %338 = vmatprep.subr.bf16.mxu0 0
    %339 = vmatpush2.bf16.msra.mxu0 0
    %340 = vmatprep.subr.bf16.mxu0 0
    %341 = vmatpush2.bf16.msra.mxu0 0
    %342 = vmatprep.subr.bf16.mxu0 0
    %343 = vmatpush2.bf16.msra.mxu0 0
    %344 = vmatprep.subr.bf16.mxu0 0
    %345 = vmatpush2.bf16.msra.mxu0 0
    %346 = vmatprep.subr.bf16.mxu0 0
    %347 = vmatpush2.bf16.msra.mxu0 0
    %348 = vmatprep.subr.bf16.mxu0 0
    %349 = vmatpush2.bf16.msra.mxu0 0
    %350 = vmatprep.mubr.bf16.mxu0 0
    %351 = vmatmul.mubr.bf16.gmra.mxu0 %v246
    %v352 = vpop.f32.mrf.mxu0
    %v353 = vadd.f32 %v268, %v352
    %v354 = vpop.f32.mrf.mxu0
    %v355 = vpop.f32.mrf.mxu0
    %v356 = vpop.f32.mrf.mxu0
    %357 = vdwg.mxu0
    %v358 = vmax.f32 %v353, 0.0
    %v359 = vpack.c.bf16 %v358, %v358
    %v360 = vld [vmem:[#allocation10] sm:$0xf]
    %v361 = vld [vmem:[#allocation10 + $0x4] sm:$0xf]
    %v362 = vld [vmem:[#allocation10 + $0x8] sm:$0xf]
    %v363 = vld [vmem:[#allocation10 + $0xc] sm:$0xf]
    %v364 = vld [vmem:[#allocation10 + $0x10] sm:$0xf]
    %v365 = vld [vmem:[#allocation10 + $0x14] sm:$0xf]
    %v366 = vld [vmem:[#allocation10 + $0x18] sm:$0xf]
    %v367 = vld [vmem:[#allocation10 + $0x1c] sm:$0xf]
    %v368 = vld [vmem:[#allocation10 + $0x20] sm:$0xf]
    %v369 = vld [vmem:[#allocation10 + $0x24] sm:$0xf]
    %v370 = vld [vmem:[#allocation10 + $0x28] sm:$0xf]
    %v371 = vld [vmem:[#allocation10 + $0x2c] sm:$0xf]
    %v372 = vld [vmem:[#allocation10 + $0x30] sm:$0xf]
    %v373 = vld [vmem:[#allocation10 + $0x34] sm:$0xf]
    %v374 = vld [vmem:[#allocation10 + $0x38] sm:$0xf]
    %v375 = vld [vmem:[#allocation10 + $0x3c] sm:$0xf]
    %v376 = vld [vmem:[%s8] sm:$0xf]
    %v378 = vsel %vm137, %v376, 0
    %380 = vmatprep.subr.bf16.mxu0 0
    %381 = vmatpush1.bf16.msra.mxu0 0
    %382 = vmatprep.subr.bf16.mxu0 0
    %383 = vmatpush1.bf16.msra.mxu0 0
    %384 = vmatprep.subr.bf16.mxu0 0
    %385 = vmatpush1.bf16.msra.mxu0 0
    %386 = vmatprep.subr.bf16.mxu0 0
    %387 = vmatpush1.bf16.msra.mxu0 0
    %388 = vmatprep.subr.bf16.mxu0 0
    %389 = vmatpush1.bf16.msra.mxu0 0
    %390 = vmatprep.subr.bf16.mxu0 0
    %391 = vmatpush1.bf16.msra.mxu0 0
    %392 = vmatprep.subr.bf16.mxu0 0
    %393 = vmatpush1.bf16.msra.mxu0 0
    %394 = vmatprep.subr.bf16.mxu0 0
    %395 = vmatpush1.bf16.msra.mxu0 %v378
    %396 = vmatprep.subr.bf16.mxu0 0
    %397 = vmatpush2.bf16.msra.mxu0 0
    %398 = vmatprep.subr.bf16.mxu0 0
    %399 = vmatpush2.bf16.msra.mxu0 0
    %400 = vmatprep.subr.bf16.mxu0 0
    %401 = vmatpush2.bf16.msra.mxu0 0
    %402 = vmatprep.subr.bf16.mxu0 0
    %403 = vmatpush2.bf16.msra.mxu0 0
    %404 = vmatprep.subr.bf16.mxu0 0
    %405 = vmatpush2.bf16.msra.mxu0 0
    %406 = vmatprep.subr.bf16.mxu0 0
    %407 = vmatpush2.bf16.msra.mxu0 0
    %408 = vmatprep.subr.bf16.mxu0 0
    %409 = vmatpush2.bf16.msra.mxu0 0
    %410 = vmatprep.subr.bf16.mxu0 0
    %411 = vmatpush2.bf16.msra.mxu0 0
    %412 = vmatprep.mubr.bf16.mxu0 0
    %413 = vmatmul.mubr.bf16.gmra.mxu0 %v135
    %v414 = vpop.f32.mrf.mxu0
    %v415 = vadd.f32 0.0, %v414
    %v416 = vpop.f32.mrf.mxu0
    %v417 = vpop.f32.mrf.mxu0
    %v418 = vpop.f32.mrf.mxu0
    %419 = vdwg.mxu0
    %v436 = vunpack.c.l.b16 %v360
    %v437 = vunpack.c.l.b16 %v361
    %v438 = vunpack.c.l.b16 %v362
    %v439 = vunpack.c.l.b16 %v363
    %v440 = vunpack.c.l.b16 %v364
    %v441 = vunpack.c.l.b16 %v365
    %v442 = vunpack.c.l.b16 %v366
    %v443 = vunpack.c.l.b16 %v367
    %v444 = vunpack.c.l.b16 %v368
    %v445 = vunpack.c.l.b16 %v369
    %v446 = vunpack.c.l.b16 %v370
    %v447 = vunpack.c.l.b16 %v371
    %v448 = vunpack.c.l.b16 %v372
    %v449 = vunpack.c.l.b16 %v373
    %v450 = vunpack.c.l.b16 %v374
    %v451 = vunpack.c.l.b16 %v375
    %v452 = vpack.c.b16 %v437, %v436
    %v453 = vpack.c.b16 %v439, %v438
    %v454 = vpack.c.b16 %v441, %v440
    %v455 = vpack.c.b16 %v443, %v442
    %v456 = vpack.c.b16 %v445, %v444
    %v457 = vpack.c.b16 %v447, %v446
    %v458 = vpack.c.b16 %v449, %v448
    %v459 = vpack.c.b16 %v451, %v450
    %468 = vmatprep.subr.bf16.mxu0 0
    %469 = vmatpush1.bf16.msra.mxu0 %v459
    %470 = vmatprep.subr.bf16.mxu0 0
    %471 = vmatpush1.bf16.msra.mxu0 %v458
    %472 = vmatprep.subr.bf16.mxu0 0
    %473 = vmatpush1.bf16.msra.mxu0 %v457
    %474 = vmatprep.subr.bf16.mxu0 0
    %475 = vmatpush1.bf16.msra.mxu0 %v456
    %476 = vmatprep.subr.bf16.mxu0 0
    %477 = vmatpush1.bf16.msra.mxu0 %v455
    %478 = vmatprep.subr.bf16.mxu0 0
    %479 = vmatpush1.bf16.msra.mxu0 %v454
    %480 = vmatprep.subr.bf16.mxu0 0
    %481 = vmatpush1.bf16.msra.mxu0 %v453
    %482 = vmatprep.subr.bf16.mxu0 0
    %483 = vmatpush1.bf16.msra.mxu0 %v452
    %484 = vmatprep.subr.bf16.mxu0 0
    %485 = vmatpush2.bf16.msra.mxu0 0
    %486 = vmatprep.subr.bf16.mxu0 0
    %487 = vmatpush2.bf16.msra.mxu0 0
    %488 = vmatprep.subr.bf16.mxu0 0
    %489 = vmatpush2.bf16.msra.mxu0 0
    %490 = vmatprep.subr.bf16.mxu0 0
    %491 = vmatpush2.bf16.msra.mxu0 0
    %492 = vmatprep.subr.bf16.mxu0 0
    %493 = vmatpush2.bf16.msra.mxu0 0
    %494 = vmatprep.subr.bf16.mxu0 0
    %495 = vmatpush2.bf16.msra.mxu0 0
    %496 = vmatprep.subr.bf16.mxu0 0
    %497 = vmatpush2.bf16.msra.mxu0 0
    %498 = vmatprep.subr.bf16.mxu0 0
    %499 = vmatpush2.bf16.msra.mxu0 0
    %500 = vmatprep.mubr.bf16.mxu0 0
    %501 = vmatmul.mubr.bf16.gmra.mxu0 %v359
    %v502 = vpop.f32.mrf.mxu0
    %v503 = vadd.f32 %v415, %v502
    %v504 = vpop.f32.mrf.mxu0
    %v505 = vpop.f32.mrf.mxu0
    %v506 = vpop.f32.mrf.mxu0
    %507 = vdwg.mxu0
    %v508 = vld [vmem:[%s9] sm:$0x1]
    %v510 = vlaneseq
    %v511 = vshrl.u32 %v510, 7
    %v512 = vsub.s32 0, %v511
    %v513 = vrot.slane %v508, %v512
    %v515 = vadd.f32 %v503, %v513
    %v516 = vmax.f32 %v515, 0.0
    %v517 = vpack.c.bf16 %v516, %v516
    %v518 = vld [vmem:[#allocation11] sm:$0xf]
    %v519 = vld [vmem:[#allocation11 + $0x4] sm:$0xf]
    %v520 = vld [vmem:[#allocation11 + $0x8] sm:$0xf]
    %v521 = vld [vmem:[#allocation11 + $0xc] sm:$0xf]
    %v522 = vld [vmem:[#allocation11 + $0x10] sm:$0xf]
    %v523 = vld [vmem:[#allocation11 + $0x14] sm:$0xf]
    %v524 = vld [vmem:[#allocation11 + $0x18] sm:$0xf]
    %v525 = vld [vmem:[#allocation11 + $0x1c] sm:$0xf]
    %v526 = vld [vmem:[#allocation11 + $0x20] sm:$0xf]
    %v527 = vld [vmem:[#allocation11 + $0x24] sm:$0xf]
    %v528 = vld [vmem:[#allocation11 + $0x28] sm:$0xf]
    %v529 = vld [vmem:[#allocation11 + $0x2c] sm:$0xf]
    %v530 = vld [vmem:[#allocation11 + $0x30] sm:$0xf]
    %v531 = vld [vmem:[#allocation11 + $0x34] sm:$0xf]
    %v532 = vld [vmem:[#allocation11 + $0x38] sm:$0xf]
    %v533 = vld [vmem:[#allocation11 + $0x3c] sm:$0xf]
    %v534 = vld [vmem:[%s11] sm:$0x1]
    %v536 = vlaneseq
    %v537 = vshrl.u32 %v536, 7
    %v538 = vsub.s32 0, %v537
    %v539 = vrot.slane %v534, %v538
    %v557 = vunpack.c.l.b16 %v518
    %v558 = vunpack.c.l.b16 %v519
    %v559 = vunpack.c.l.b16 %v520
    %v560 = vunpack.c.l.b16 %v521
    %v561 = vunpack.c.l.b16 %v522
    %v562 = vunpack.c.l.b16 %v523
    %v563 = vunpack.c.l.b16 %v524
    %v564 = vunpack.c.l.b16 %v525
    %v565 = vunpack.c.l.b16 %v526
    %v566 = vunpack.c.l.b16 %v527
    %v567 = vunpack.c.l.b16 %v528
    %v568 = vunpack.c.l.b16 %v529
    %v569 = vunpack.c.l.b16 %v530
    %v570 = vunpack.c.l.b16 %v531
    %v571 = vunpack.c.l.b16 %v532
    %v572 = vunpack.c.l.b16 %v533
    %v573 = vpack.c.b16 %v558, %v557
    %v574 = vpack.c.b16 %v560, %v559
    %v575 = vpack.c.b16 %v562, %v561
    %v576 = vpack.c.b16 %v564, %v563
    %v577 = vpack.c.b16 %v566, %v565
    %v578 = vpack.c.b16 %v568, %v567
    %v579 = vpack.c.b16 %v570, %v569
    %v580 = vpack.c.b16 %v572, %v571
    %589 = vmatprep.subr.bf16.mxu0 0
    %590 = vmatpush1.bf16.msra.mxu0 %v580
    %591 = vmatprep.subr.bf16.mxu0 0
    %592 = vmatpush1.bf16.msra.mxu0 %v579
    %593 = vmatprep.subr.bf16.mxu0 0
    %594 = vmatpush1.bf16.msra.mxu0 %v578
    %595 = vmatprep.subr.bf16.mxu0 0
    %596 = vmatpush1.bf16.msra.mxu0 %v577
    %597 = vmatprep.subr.bf16.mxu0 0
    %598 = vmatpush1.bf16.msra.mxu0 %v576
    %599 = vmatprep.subr.bf16.mxu0 0
    %600 = vmatpush1.bf16.msra.mxu0 %v575
    %601 = vmatprep.subr.bf16.mxu0 0
    %602 = vmatpush1.bf16.msra.mxu0 %v574
    %603 = vmatprep.subr.bf16.mxu0 0
    %604 = vmatpush1.bf16.msra.mxu0 %v573
    %605 = vmatprep.subr.bf16.mxu0 0
    %606 = vmatpush2.bf16.msra.mxu0 0
    %607 = vmatprep.subr.bf16.mxu0 0
    %608 = vmatpush2.bf16.msra.mxu0 0
    %609 = vmatprep.subr.bf16.mxu0 0
    %610 = vmatpush2.bf16.msra.mxu0 0
    %611 = vmatprep.subr.bf16.mxu0 0
    %612 = vmatpush2.bf16.msra.mxu0 0
    %613 = vmatprep.subr.bf16.mxu0 0
    %614 = vmatpush2.bf16.msra.mxu0 0
    %615 = vmatprep.subr.bf16.mxu0 0
    %616 = vmatpush2.bf16.msra.mxu0 0
    %617 = vmatprep.subr.bf16.mxu0 0
    %618 = vmatpush2.bf16.msra.mxu0 0
    %619 = vmatprep.subr.bf16.mxu0 0
    %620 = vmatpush2.bf16.msra.mxu0 0
    %621 = vmatprep.mubr.bf16.mxu0 0
    %622 = vmatmul.mubr.bf16.gmra.mxu0 %v517
    %v623 = vpop.f32.mrf.mxu0
    %v624 = vadd.f32 %v539, %v623
    %v625 = vpop.f32.mrf.mxu0
    %v626 = vpop.f32.mrf.mxu0
    %v627 = vpop.f32.mrf.mxu0
    %628 = vdwg.mxu0
    %v629 = vsub.f32 0.0, %v624
    %v630 = vmul.f32 %v629, 1.442695
    %v631 = vpow.pop %v630
    %v632 = vadd.f32 %v631, 1.0
    %v633 = vrcp.pop %v632
    %v634 = vpack.c.bf16 %v633, %v633
    %635 = vst [vmem:[#allocation13] sm:$0xf] %v634
    %636 = vst [vmem:[#allocation14] sm:$0xf] %v359
    // Predicated region
    $region74: #{tpu_custom_call.1} parent=1 // pred_check
      _
    $region75: #{tpu_custom_call.1} parent=1 // pred_check_branch
      %638 = sbr.rel (0) target = $region77
    $region76: #{tpu_custom_call.1} parent=1 // pred_region
      %s640 = ssub.s32 64, 64
      %641 = vsyncadd [#allocation4], %s640
      %s643 = sshll.u32 [#allocation13], 4
      %s644 = int_to_ptr.vmem [resolvable:$true] %s643
      %646 = dma.vmem_to_hbm [thread:$0]  %s644, 64, %s12, [#allocation4]
    $region77: #{tpu_custom_call.1} parent=1 // pred_fallthru
      _
    // Predicated region
    $region78: #{tpu_custom_call.1} parent=1 // pred_check
      _
    $region79: #{tpu_custom_call.1} parent=1 // pred_check_branch
      %648 = sbr.rel (0) target = $region81
    $region80: #{tpu_custom_call.1} parent=1 // pred_region
      %s650 = ssub.s32 64, 64
      %651 = vsyncadd [#allocation15], %s650
      %s653 = sshll.u32 [#allocation14], 4
      %s654 = int_to_ptr.vmem [resolvable:$true] %s653
      %656 = dma.vmem_to_hbm [thread:$0]  %s654, 64, %s13, [#allocation15]
    $region81: #{tpu_custom_call.1} parent=1 // pred_fallthru
      _
    // Predicated region
    $region82: #{tpu_custom_call.1} parent=1 // pred_check
      _
    $region83: #{tpu_custom_call.1} parent=1 // pred_check_branch
      %658 = sbr.rel (0) target = $region85
    $region84: #{tpu_custom_call.1} parent=1 // pred_region
      %659 = dma.done [#allocation4], 64
    $region85: #{tpu_custom_call.1} parent=1 // pred_fallthru
      _
    // Predicated region
    $region86: #{tpu_custom_call.1} parent=1 // pred_check
      _
    $region87: #{tpu_custom_call.1} parent=1 // pred_check_branch
      %661 = sbr.rel (0) target = $region89
    $region88: #{tpu_custom_call.1} parent=1 // pred_region
      %662 = dma.done [#allocation15], 64
    $region89: #{tpu_custom_call.1} parent=1 // pred_fallthru
      _
    %663 = vsyncpa [#allocation3], 1
    %664 = vsyncpa [#allocation6], 1
    %665 = vsyncpa [#allocation9], 1
    %666 = vsyncpa [#allocation12], 1
    %667 = vsyncpa [#allocation4], 1
    %668 = vsyncpa [#allocation15], 1

</llo_original>
